<compile_context>
chip_gen: v5e
topology: v5e:2x2
jax: 0.10.0
libtpu: 0.0.40
codegen_flags: <defaults>
</compile_context>

<pallas_src>
import functools

import jax
import jax.numpy as jnp
import numpy as np
from jax.experimental import pallas as pl
from jax.experimental.pallas import tpu as pltpu


def _round_up(x, m):
    return ((x + m - 1) // m) * m


# ----------------------------- Fused Pallas kernel ---------------------------

def fused_sentiment_kernel(tok_ref, emb_ref, h0_ref, c0_ref, *rest):
    """Whole forward pass in one kernel invocation (everything VMEM-resident).

    tok_ref : (T*B, 1) int32   time-major flattened (batch-padded) token ids
    emb_ref : (V, E)   f32     embedding table
    h0/c0   : (L, B, H) f32    initial hidden / cell state (B = padded batch)
    rest    : per-layer (W_ih (in,4H), W_hh (H,4H), b (1,4H)) * L,
              then W_fc (H,O), b_fc (1,O),
              then outputs sig (B,O), hn (L,B,H), cn (L,B,H)
    """
    num_layers, B, H = h0_ref.shape
    layer_refs = rest[:3 * num_layers]
    wfc_ref = rest[3 * num_layers]
    bfc_ref = rest[3 * num_layers + 1]
    sig_ref, hn_ref, cn_ref = rest[3 * num_layers + 2:]

    vocab = emb_ref.shape[0]
    TB = tok_ref.shape[0]
    T = TB // B

    # In-kernel embedding gather: one-hot(tokens) @ table (pure VPU compare + one MXU
    # matmul) -- removes the XLA gather + (B,T,E) transpose glue and its HBM round trip.
    tok = tok_ref[...]                                                      # (T*B, 1)
    onehot = (tok == jax.lax.broadcasted_iota(jnp.int32, (TB, vocab), 1)
              ).astype(jnp.float32)                                         # (T*B, V)
    x = jnp.dot(onehot, emb_ref[...], preferred_element_type=jnp.float32)   # (T*B, E)

    h = None
    for layer in range(num_layers):
        w_ih = layer_refs[3 * layer][...]        # (in, 4H)  -- loaded once per layer
        w_hh = layer_refs[3 * layer + 1][...]    # (H, 4H)
        b = layer_refs[3 * layer + 2][...]       # (1, 4H)

        # Hoisted input projection: one big matmul for all T timesteps of this layer.
        gx = jnp.dot(x, w_ih, preferred_element_type=jnp.float32) + b       # (T*B, 4H)

        h = h0_ref[layer]                                                   # (B, H)
        c = c0_ref[layer]
        outs = []
        for t in range(T):   # static unroll; serial path = one tiny matmul + elementwise
            g = gx[t * B:(t + 1) * B, :] + jnp.dot(
                h, w_hh, preferred_element_type=jnp.float32)                # (B, 4H)
            # Activations on the full 4H(=128)-lane vreg, then cheap static slices.
            sg = jax.nn.sigmoid(g)
            tg = jnp.tanh(g)
            i_g = sg[:, 0 * H:1 * H]
            f_g = sg[:, 1 * H:2 * H]
            g_g = tg[:, 2 * H:3 * H]
            o_g = sg[:, 3 * H:4 * H]
            c = f_g * c + i_g * g_g
            h = o_g * jnp.tanh(c)
            outs.append(h)

        hn_ref[layer] = h
        cn_ref[layer] = c
        x = jnp.concatenate(outs, axis=0)        # (T*B, H) time-major -> next layer input

    # TODO(synk): nn.Dropout(0.3) treated as inference-mode identity (deterministic).
    logits = jnp.dot(h, wfc_ref[...], preferred_element_type=jnp.float32) + bfc_ref[...]
    sig_ref[...] = jax.nn.sigmoid(logits)        # last-timestep only (matches [:, -1])


# ------------------------------- Wrapper --------------------------------------

@jax.jit
def sentiment_rnn_forward(tokens, hidden, params):
    """tokens: (B, T) int; hidden: (h0, c0) each (L, B, H) f32.
    Returns (sig_out (B,), (h_n, c_n)) -- matches PyTorch SentimentRNN.forward."""
    h0_all, c0_all = hidden
    L, B, H = h0_all.shape
    T = tokens.shape[1]
    O = params["w_fc"].shape[-1]
    Bp = _round_up(B, 8)                          # pad batch to full sublanes

    tok_p = jnp.pad(tokens.astype(jnp.int32), ((0, Bp - B), (0, 0)))
    tok_flat = jnp.transpose(tok_p, (1, 0)).reshape(T * Bp, 1)   # time-major flat ids
    h0_p = jnp.pad(h0_all.astype(jnp.float32), ((0, 0), (0, Bp - B), (0, 0)))
    c0_p = jnp.pad(c0_all.astype(jnp.float32), ((0, 0), (0, Bp - B), (0, 0)))

    layer_args = []
    for l in range(L):
        layer_args += [params["w_ih"][l], params["w_hh"][l], params["b"][l]]

    n_in = 4 + len(layer_args) + 2
    vmem = pl.BlockSpec(memory_space=pltpu.MemorySpace.VMEM)

    sig, hn, cn = pl.pallas_call(
        fused_sentiment_kernel,
        out_shape=(jax.ShapeDtypeStruct((Bp, O), jnp.float32),
                   jax.ShapeDtypeStruct((L, Bp, H), jnp.float32),
                   jax.ShapeDtypeStruct((L, Bp, H), jnp.float32)),
        in_specs=[vmem] * n_in,
        out_specs=(vmem, vmem, vmem),
    )(tok_flat, params["embedding"].astype(jnp.float32), h0_p, c0_p,
      *layer_args, params["w_fc"], params["b_fc"])

    sig_out = sig[:B, -1]                         # == sig.view(B, -1)[:, -1]
    return sig_out, (hn[:, :B], cn[:, :B])


# --------------------------- Pure-JAX reference -----------------------------

def lstm_layer_ref(x_tbe, h0, c0, w_ih, w_hh, b):
    H = h0.shape[-1]

    def step(carry, x_t):
        h, c = carry
        g = x_t @ w_ih + h @ w_hh + b[0]
        i = jax.nn.sigmoid(g[:, 0 * H:1 * H])
        f = jax.nn.sigmoid(g[:, 1 * H:2 * H])
        gg = jnp.tanh(g[:, 2 * H:3 * H])
        o = jax.nn.sigmoid(g[:, 3 * H:4 * H])
        c = f * c + i * gg
        h = o * jnp.tanh(c)
        return (h, c), h

    (hn, cn), out = jax.lax.scan(step, (h0, c0), x_tbe)
    return out, hn, cn


def forward_ref(tokens, hidden, params):
    h0_all, c0_all = hidden
    x = jnp.transpose(params["embedding"][tokens], (1, 0, 2)).astype(jnp.float32)
    hs, cs = [], []
    for layer in range(len(params["w_ih"])):
        x, hn, cn = lstm_layer_ref(x, h0_all[layer], c0_all[layer],
                                   params["w_ih"][layer], params["w_hh"][layer],
                                   params["b"][layer])
        hs.append(hn)
        cs.append(cn)
    sig = jax.nn.sigmoid(x[-1] @ params["w_fc"] + params["b_fc"])
    return sig[:, -1], (jnp.stack(hs), jnp.stack(cs))


# ---------------------------------- Main -------------------------------------

if __name__ == "__main__":
    # Small config consistent with the module's __init__
    no_layers, vocab_size, output_dim = 2, 64, 1
    hidden_dim, embedding_dim = 32, 32
    B, T = 2, 8

    key = jax.random.PRNGKey(0)
    ks = jax.random.split(key, 4 + 4 * no_layers)
    scale = 1.0 / np.sqrt(hidden_dim)

    w_ih, w_hh, b = [], [], []
    for l in range(no_layers):
        in_dim = embedding_dim if l == 0 else hidden_dim
        w_ih.append(jax.random.uniform(ks[4 + 4 * l], (in_dim, 4 * hidden_dim),
                                       jnp.float32, -scale, scale))
        w_hh.append(jax.random.uniform(ks[5 + 4 * l], (hidden_dim, 4 * hidden_dim),
                                       jnp.float32, -scale, scale))
        b_ih = jax.random.uniform(ks[6 + 4 * l], (4 * hidden_dim,), jnp.float32, -scale, scale)
        b_hh = jax.random.uniform(ks[7 + 4 * l], (4 * hidden_dim,), jnp.float32, -scale, scale)
        b.append((b_ih + b_hh)[None, :])  # (1, 4H)

    params = {
        "embedding": jax.random.normal(ks[0], (vocab_size, embedding_dim), jnp.float32),
        "w_ih": w_ih, "w_hh": w_hh, "b": b,
        "w_fc": jax.random.uniform(ks[1], (hidden_dim, output_dim), jnp.float32, -scale, scale),
        "b_fc": jax.random.uniform(ks[2], (1, output_dim), jnp.float32, -scale, scale),
    }

    tokens = jax.random.randint(ks[3], (B, T), 0, vocab_size, dtype=jnp.int32)
    hidden = (jnp.zeros((no_layers, B, hidden_dim), jnp.float32),
              jnp.zeros((no_layers, B, hidden_dim), jnp.float32))

    sig_out, (h_n, c_n) = sentiment_rnn_forward(tokens, hidden, params)
    jax.block_until_ready((sig_out, h_n, c_n))

    ref_out, (ref_h, ref_c) = forward_ref(tokens, hidden, params)
    np.testing.assert_allclose(np.asarray(sig_out), np.asarray(ref_out), rtol=1e-5, atol=1e-5)
    np.testing.assert_allclose(np.asarray(h_n), np.asarray(ref_h), rtol=1e-5, atol=1e-5)
    np.testing.assert_allclose(np.asarray(c_n), np.asarray(ref_c), rtol=1e-5, atol=1e-5)

    print("KERNEL_OK")
</pallas_src>

<mosaic_0001>
module attributes {stable_mosaic.version = 11 : i64} {
  func.func @fused_sentiment_kernel(%arg0: memref<64x1xi32, #tpu.memory_space<vmem>>, %arg1: memref<64x32xf32, #tpu.memory_space<vmem>>, %arg2: memref<2x8x32xf32, #tpu.memory_space<vmem>>, %arg3: memref<2x8x32xf32, #tpu.memory_space<vmem>>, %arg4: memref<32x128xf32, #tpu.memory_space<vmem>>, %arg5: memref<32x128xf32, #tpu.memory_space<vmem>>, %arg6: memref<1x128xf32, #tpu.memory_space<vmem>>, %arg7: memref<32x128xf32, #tpu.memory_space<vmem>>, %arg8: memref<32x128xf32, #tpu.memory_space<vmem>>, %arg9: memref<1x128xf32, #tpu.memory_space<vmem>>, %arg10: memref<32x1xf32, #tpu.memory_space<vmem>>, %arg11: memref<1x1xf32, #tpu.memory_space<vmem>>, %arg12: memref<8x1xf32, #tpu.memory_space<vmem>>, %arg13: memref<2x8x32xf32, #tpu.memory_space<vmem>>, %arg14: memref<2x8x32xf32, #tpu.memory_space<vmem>>) attributes {dimension_semantics = [], scalar_prefetch = 0 : i64, scratch_operands = 0 : i64, tpu.core_type = #tpu.core_type<tc>} {
    %c0 = arith.constant 0 : index
    %c0_0 = arith.constant 0 : index
    %0 = vector.load %arg0[%c0, %c0_0] : memref<64x1xi32, #tpu.memory_space<vmem>>, vector<64x1xi32>
    %1 = tpu.iota {dimensions = array<i32: 1>} : vector<64x64xi32>
    %2 = vector.broadcast %0 : vector<64x1xi32> to vector<64x64xi32>
    %3 = arith.cmpi eq, %2, %1 : vector<64x64xi32>
    %4 = arith.extui %3 : vector<64x64xi1> to vector<64x64xi32>
    %5 = arith.sitofp %4 : vector<64x64xi32> to vector<64x64xf32>
    %c0_1 = arith.constant 0 : index
    %c0_2 = arith.constant 0 : index
    %6 = vector.load %arg1[%c0_1, %c0_2] : memref<64x32xf32, #tpu.memory_space<vmem>>, vector<64x32xf32>
    %cst = arith.constant dense<0.000000e+00> : vector<64x32xf32>
    %7 = tpu.matmul %5, %6, %cst {dimension_numbers = #tpu.dot_dimension_numbers<[1], [0], [0], [1], [0, 0, 1, 1], [], []>} : vector<64x64xf32>, vector<64x32xf32>, vector<64x32xf32> -> vector<64x32xf32>
    %c0_3 = arith.constant 0 : index
    %c0_4 = arith.constant 0 : index
    %8 = vector.load %arg4[%c0_3, %c0_4] : memref<32x128xf32, #tpu.memory_space<vmem>>, vector<32x128xf32>
    %c0_5 = arith.constant 0 : index
    %c0_6 = arith.constant 0 : index
    %9 = vector.load %arg5[%c0_5, %c0_6] : memref<32x128xf32, #tpu.memory_space<vmem>>, vector<32x128xf32>
    %c0_7 = arith.constant 0 : index
    %c0_8 = arith.constant 0 : index
    %10 = vector.load %arg6[%c0_7, %c0_8] : memref<1x128xf32, #tpu.memory_space<vmem>>, vector<1x128xf32>
    %cst_9 = arith.constant dense<0.000000e+00> : vector<64x128xf32>
    %11 = tpu.matmul %7, %8, %cst_9 {dimension_numbers = #tpu.dot_dimension_numbers<[1], [0], [0], [1], [0, 0, 1, 1], [], []>} : vector<64x32xf32>, vector<32x128xf32>, vector<64x128xf32> -> vector<64x128xf32>
    %12 = vector.broadcast %10 : vector<1x128xf32> to vector<64x128xf32>
    %13 = arith.addf %11, %12 : vector<64x128xf32>
    %c0_10 = arith.constant 0 : index
    %c0_11 = arith.constant 0 : index
    %c0_12 = arith.constant 0 : index
    %14 = vector.load %arg2[%c0_10, %c0_11, %c0_12] : memref<2x8x32xf32, #tpu.memory_space<vmem>>, vector<1x8x32xf32>
    %15 = vector.shape_cast %14 : vector<1x8x32xf32> to vector<8x32xf32>
    %c0_13 = arith.constant 0 : index
    %c0_14 = arith.constant 0 : index
    %c0_15 = arith.constant 0 : index
    %16 = vector.load %arg3[%c0_13, %c0_14, %c0_15] : memref<2x8x32xf32, #tpu.memory_space<vmem>>, vector<1x8x32xf32>
    %17 = vector.shape_cast %16 : vector<1x8x32xf32> to vector<8x32xf32>
    %18 = vector.extract_strided_slice %13 {offsets = [0, 0], sizes = [8, 128], strides = [1, 1]} : vector<64x128xf32> to vector<8x128xf32>
    %cst_16 = arith.constant dense<0.000000e+00> : vector<8x128xf32>
    %19 = tpu.matmul %15, %9, %cst_16 {dimension_numbers = #tpu.dot_dimension_numbers<[1], [0], [0], [1], [0, 0, 1, 1], [], []>} : vector<8x32xf32>, vector<32x128xf32>, vector<8x128xf32> -> vector<8x128xf32>
    %20 = arith.addf %18, %19 : vector<8x128xf32>
    %21 = arith.negf %20 : vector<8x128xf32>
    %22 = math.exp %21 : vector<8x128xf32>
    %cst_17 = arith.constant 1.000000e+00 : f32
    %23 = vector.broadcast %cst_17 : f32 to vector<8x128xf32>
    %24 = arith.addf %23, %22 : vector<8x128xf32>
    %25 = arith.divf %23, %24 : vector<8x128xf32>
    %26 = math.tanh %20 : vector<8x128xf32>
    %27 = vector.extract_strided_slice %25 {offsets = [0, 0], sizes = [8, 32], strides = [1, 1]} : vector<8x128xf32> to vector<8x32xf32>
    %28 = vector.extract_strided_slice %25 {offsets = [0, 32], sizes = [8, 32], strides = [1, 1]} : vector<8x128xf32> to vector<8x32xf32>
    %29 = vector.extract_strided_slice %26 {offsets = [0, 64], sizes = [8, 32], strides = [1, 1]} : vector<8x128xf32> to vector<8x32xf32>
    %30 = vector.extract_strided_slice %25 {offsets = [0, 96], sizes = [8, 32], strides = [1, 1]} : vector<8x128xf32> to vector<8x32xf32>
    %31 = arith.mulf %28, %17 : vector<8x32xf32>
    %32 = arith.mulf %27, %29 : vector<8x32xf32>
    %33 = arith.addf %31, %32 : vector<8x32xf32>
    %34 = math.tanh %33 : vector<8x32xf32>
    %35 = arith.mulf %30, %34 : vector<8x32xf32>
    %36 = vector.extract_strided_slice %13 {offsets = [8, 0], sizes = [8, 128], strides = [1, 1]} : vector<64x128xf32> to vector<8x128xf32>
    %cst_18 = arith.constant dense<0.000000e+00> : vector<8x128xf32>
    %37 = tpu.matmul %35, %9, %cst_18 {dimension_numbers = #tpu.dot_dimension_numbers<[1], [0], [0], [1], [0, 0, 1, 1], [], []>} : vector<8x32xf32>, vector<32x128xf32>, vector<8x128xf32> -> vector<8x128xf32>
    %38 = arith.addf %36, %37 : vector<8x128xf32>
    %39 = arith.negf %38 : vector<8x128xf32>
    %40 = math.exp %39 : vector<8x128xf32>
    %cst_19 = arith.constant 1.000000e+00 : f32
    %41 = vector.broadcast %cst_19 : f32 to vector<8x128xf32>
    %42 = arith.addf %41, %40 : vector<8x128xf32>
    %43 = arith.divf %41, %42 : vector<8x128xf32>
    %44 = math.tanh %38 : vector<8x128xf32>
    %45 = vector.extract_strided_slice %43 {offsets = [0, 0], sizes = [8, 32], strides = [1, 1]} : vector<8x128xf32> to vector<8x32xf32>
    %46 = vector.extract_strided_slice %43 {offsets = [0, 32], sizes = [8, 32], strides = [1, 1]} : vector<8x128xf32> to vector<8x32xf32>
    %47 = vector.extract_strided_slice %44 {offsets = [0, 64], sizes = [8, 32], strides = [1, 1]} : vector<8x128xf32> to vector<8x32xf32>
    %48 = vector.extract_strided_slice %43 {offsets = [0, 96], sizes = [8, 32], strides = [1, 1]} : vector<8x128xf32> to vector<8x32xf32>
    %49 = arith.mulf %46, %33 : vector<8x32xf32>
    %50 = arith.mulf %45, %47 : vector<8x32xf32>
    %51 = arith.addf %49, %50 : vector<8x32xf32>
    %52 = math.tanh %51 : vector<8x32xf32>
    %53 = arith.mulf %48, %52 : vector<8x32xf32>
    %54 = vector.extract_strided_slice %13 {offsets = [16, 0], sizes = [8, 128], strides = [1, 1]} : vector<64x128xf32> to vector<8x128xf32>
    %cst_20 = arith.constant dense<0.000000e+00> : vector<8x128xf32>
    %55 = tpu.matmul %53, %9, %cst_20 {dimension_numbers = #tpu.dot_dimension_numbers<[1], [0], [0], [1], [0, 0, 1, 1], [], []>} : vector<8x32xf32>, vector<32x128xf32>, vector<8x128xf32> -> vector<8x128xf32>
    %56 = arith.addf %54, %55 : vector<8x128xf32>
    %57 = arith.negf %56 : vector<8x128xf32>
    %58 = math.exp %57 : vector<8x128xf32>
    %cst_21 = arith.constant 1.000000e+00 : f32
    %59 = vector.broadcast %cst_21 : f32 to vector<8x128xf32>
    %60 = arith.addf %59, %58 : vector<8x128xf32>
    %61 = arith.divf %59, %60 : vector<8x128xf32>
    %62 = math.tanh %56 : vector<8x128xf32>
    %63 = vector.extract_strided_slice %61 {offsets = [0, 0], sizes = [8, 32], strides = [1, 1]} : vector<8x128xf32> to vector<8x32xf32>
    %64 = vector.extract_strided_slice %61 {offsets = [0, 32], sizes = [8, 32], strides = [1, 1]} : vector<8x128xf32> to vector<8x32xf32>
    %65 = vector.extract_strided_slice %62 {offsets = [0, 64], sizes = [8, 32], strides = [1, 1]} : vector<8x128xf32> to vector<8x32xf32>
    %66 = vector.extract_strided_slice %61 {offsets = [0, 96], sizes = [8, 32], strides = [1, 1]} : vector<8x128xf32> to vector<8x32xf32>
    %67 = arith.mulf %64, %51 : vector<8x32xf32>
    %68 = arith.mulf %63, %65 : vector<8x32xf32>
    %69 = arith.addf %67, %68 : vector<8x32xf32>
    %70 = math.tanh %69 : vector<8x32xf32>
    %71 = arith.mulf %66, %70 : vector<8x32xf32>
    %72 = vector.extract_strided_slice %13 {offsets = [24, 0], sizes = [8, 128], strides = [1, 1]} : vector<64x128xf32> to vector<8x128xf32>
    %cst_22 = arith.constant dense<0.000000e+00> : vector<8x128xf32>
    %73 = tpu.matmul %71, %9, %cst_22 {dimension_numbers = #tpu.dot_dimension_numbers<[1], [0], [0], [1], [0, 0, 1, 1], [], []>} : vector<8x32xf32>, vector<32x128xf32>, vector<8x128xf32> -> vector<8x128xf32>
    %74 = arith.addf %72, %73 : vector<8x128xf32>
    %75 = arith.negf %74 : vector<8x128xf32>
    %76 = math.exp %75 : vector<8x128xf32>
    %cst_23 = arith.constant 1.000000e+00 : f32
    %77 = vector.broadcast %cst_23 : f32 to vector<8x128xf32>
    %78 = arith.addf %77, %76 : vector<8x128xf32>
    %79 = arith.divf %77, %78 : vector<8x128xf32>
    %80 = math.tanh %74 : vector<8x128xf32>
    %81 = vector.extract_strided_slice %79 {offsets = [0, 0], sizes = [8, 32], strides = [1, 1]} : vector<8x128xf32> to vector<8x32xf32>
    %82 = vector.extract_strided_slice %79 {offsets = [0, 32], sizes = [8, 32], strides = [1, 1]} : vector<8x128xf32> to vector<8x32xf32>
    %83 = vector.extract_strided_slice %80 {offsets = [0, 64], sizes = [8, 32], strides = [1, 1]} : vector<8x128xf32> to vector<8x32xf32>
    %84 = vector.extract_strided_slice %79 {offsets = [0, 96], sizes = [8, 32], strides = [1, 1]} : vector<8x128xf32> to vector<8x32xf32>
    %85 = arith.mulf %82, %69 : vector<8x32xf32>
    %86 = arith.mulf %81, %83 : vector<8x32xf32>
    %87 = arith.addf %85, %86 : vector<8x32xf32>
    %88 = math.tanh %87 : vector<8x32xf32>
    %89 = arith.mulf %84, %88 : vector<8x32xf32>
    %90 = vector.extract_strided_slice %13 {offsets = [32, 0], sizes = [8, 128], strides = [1, 1]} : vector<64x128xf32> to vector<8x128xf32>
    %cst_24 = arith.constant dense<0.000000e+00> : vector<8x128xf32>
    %91 = tpu.matmul %89, %9, %cst_24 {dimension_numbers = #tpu.dot_dimension_numbers<[1], [0], [0], [1], [0, 0, 1, 1], [], []>} : vector<8x32xf32>, vector<32x128xf32>, vector<8x128xf32> -> vector<8x128xf32>
    %92 = arith.addf %90, %91 : vector<8x128xf32>
    %93 = arith.negf %92 : vector<8x128xf32>
    %94 = math.exp %93 : vector<8x128xf32>
    %cst_25 = arith.constant 1.000000e+00 : f32
    %95 = vector.broadcast %cst_25 : f32 to vector<8x128xf32>
    %96 = arith.addf %95, %94 : vector<8x128xf32>
    %97 = arith.divf %95, %96 : vector<8x128xf32>
    %98 = math.tanh %92 : vector<8x128xf32>
    %99 = vector.extract_strided_slice %97 {offsets = [0, 0], sizes = [8, 32], strides = [1, 1]} : vector<8x128xf32> to vector<8x32xf32>
    %100 = vector.extract_strided_slice %97 {offsets = [0, 32], sizes = [8, 32], strides = [1, 1]} : vector<8x128xf32> to vector<8x32xf32>
    %101 = vector.extract_strided_slice %98 {offsets = [0, 64], sizes = [8, 32], strides = [1, 1]} : vector<8x128xf32> to vector<8x32xf32>
    %102 = vector.extract_strided_slice %97 {offsets = [0, 96], sizes = [8, 32], strides = [1, 1]} : vector<8x128xf32> to vector<8x32xf32>
    %103 = arith.mulf %100, %87 : vector<8x32xf32>
    %104 = arith.mulf %99, %101 : vector<8x32xf32>
    %105 = arith.addf %103, %104 : vector<8x32xf32>
    %106 = math.tanh %105 : vector<8x32xf32>
    %107 = arith.mulf %102, %106 : vector<8x32xf32>
    %108 = vector.extract_strided_slice %13 {offsets = [40, 0], sizes = [8, 128], strides = [1, 1]} : vector<64x128xf32> to vector<8x128xf32>
    %cst_26 = arith.constant dense<0.000000e+00> : vector<8x128xf32>
    %109 = tpu.matmul %107, %9, %cst_26 {dimension_numbers = #tpu.dot_dimension_numbers<[1], [0], [0], [1], [0, 0, 1, 1], [], []>} : vector<8x32xf32>, vector<32x128xf32>, vector<8x128xf32> -> vector<8x128xf32>
    %110 = arith.addf %108, %109 : vector<8x128xf32>
    %111 = arith.negf %110 : vector<8x128xf32>
    %112 = math.exp %111 : vector<8x128xf32>
    %cst_27 = arith.constant 1.000000e+00 : f32
    %113 = vector.broadcast %cst_27 : f32 to vector<8x128xf32>
    %114 = arith.addf %113, %112 : vector<8x128xf32>
    %115 = arith.divf %113, %114 : vector<8x128xf32>
    %116 = math.tanh %110 : vector<8x128xf32>
    %117 = vector.extract_strided_slice %115 {offsets = [0, 0], sizes = [8, 32], strides = [1, 1]} : vector<8x128xf32> to vector<8x32xf32>
    %118 = vector.extract_strided_slice %115 {offsets = [0, 32], sizes = [8, 32], strides = [1, 1]} : vector<8x128xf32> to vector<8x32xf32>
    %119 = vector.extract_strided_slice %116 {offsets = [0, 64], sizes = [8, 32], strides = [1, 1]} : vector<8x128xf32> to vector<8x32xf32>
    %120 = vector.extract_strided_slice %115 {offsets = [0, 96], sizes = [8, 32], strides = [1, 1]} : vector<8x128xf32> to vector<8x32xf32>
    %121 = arith.mulf %118, %105 : vector<8x32xf32>
    %122 = arith.mulf %117, %119 : vector<8x32xf32>
    %123 = arith.addf %121, %122 : vector<8x32xf32>
    %124 = math.tanh %123 : vector<8x32xf32>
    %125 = arith.mulf %120, %124 : vector<8x32xf32>
    %126 = vector.extract_strided_slice %13 {offsets = [48, 0], sizes = [8, 128], strides = [1, 1]} : vector<64x128xf32> to vector<8x128xf32>
    %cst_28 = arith.constant dense<0.000000e+00> : vector<8x128xf32>
    %127 = tpu.matmul %125, %9, %cst_28 {dimension_numbers = #tpu.dot_dimension_numbers<[1], [0], [0], [1], [0, 0, 1, 1], [], []>} : vector<8x32xf32>, vector<32x128xf32>, vector<8x128xf32> -> vector<8x128xf32>
    %128 = arith.addf %126, %127 : vector<8x128xf32>
    %129 = arith.negf %128 : vector<8x128xf32>
    %130 = math.exp %129 : vector<8x128xf32>
    %cst_29 = arith.constant 1.000000e+00 : f32
    %131 = vector.broadcast %cst_29 : f32 to vector<8x128xf32>
    %132 = arith.addf %131, %130 : vector<8x128xf32>
    %133 = arith.divf %131, %132 : vector<8x128xf32>
    %134 = math.tanh %128 : vector<8x128xf32>
    %135 = vector.extract_strided_slice %133 {offsets = [0, 0], sizes = [8, 32], strides = [1, 1]} : vector<8x128xf32> to vector<8x32xf32>
    %136 = vector.extract_strided_slice %133 {offsets = [0, 32], sizes = [8, 32], strides = [1, 1]} : vector<8x128xf32> to vector<8x32xf32>
    %137 = vector.extract_strided_slice %134 {offsets = [0, 64], sizes = [8, 32], strides = [1, 1]} : vector<8x128xf32> to vector<8x32xf32>
    %138 = vector.extract_strided_slice %133 {offsets = [0, 96], sizes = [8, 32], strides = [1, 1]} : vector<8x128xf32> to vector<8x32xf32>
    %139 = arith.mulf %136, %123 : vector<8x32xf32>
    %140 = arith.mulf %135, %137 : vector<8x32xf32>
    %141 = arith.addf %139, %140 : vector<8x32xf32>
    %142 = math.tanh %141 : vector<8x32xf32>
    %143 = arith.mulf %138, %142 : vector<8x32xf32>
    %144 = vector.extract_strided_slice %13 {offsets = [56, 0], sizes = [8, 128], strides = [1, 1]} : vector<64x128xf32> to vector<8x128xf32>
    %cst_30 = arith.constant dense<0.000000e+00> : vector<8x128xf32>
    %145 = tpu.matmul %143, %9, %cst_30 {dimension_numbers = #tpu.dot_dimension_numbers<[1], [0], [0], [1], [0, 0, 1, 1], [], []>} : vector<8x32xf32>, vector<32x128xf32>, vector<8x128xf32> -> vector<8x128xf32>
    %146 = arith.addf %144, %145 : vector<8x128xf32>
    %147 = arith.negf %146 : vector<8x128xf32>
    %148 = math.exp %147 : vector<8x128xf32>
    %cst_31 = arith.constant 1.000000e+00 : f32
    %149 = vector.broadcast %cst_31 : f32 to vector<8x128xf32>
    %150 = arith.addf %149, %148 : vector<8x128xf32>
    %151 = arith.divf %149, %150 : vector<8x128xf32>
    %152 = math.tanh %146 : vector<8x128xf32>
    %153 = vector.extract_strided_slice %151 {offsets = [0, 0], sizes = [8, 32], strides = [1, 1]} : vector<8x128xf32> to vector<8x32xf32>
    %154 = vector.extract_strided_slice %151 {offsets = [0, 32], sizes = [8, 32], strides = [1, 1]} : vector<8x128xf32> to vector<8x32xf32>
    %155 = vector.extract_strided_slice %152 {offsets = [0, 64], sizes = [8, 32], strides = [1, 1]} : vector<8x128xf32> to vector<8x32xf32>
    %156 = vector.extract_strided_slice %151 {offsets = [0, 96], sizes = [8, 32], strides = [1, 1]} : vector<8x128xf32> to vector<8x32xf32>
    %157 = arith.mulf %154, %141 : vector<8x32xf32>
    %158 = arith.mulf %153, %155 : vector<8x32xf32>
    %159 = arith.addf %157, %158 : vector<8x32xf32>
    %160 = math.tanh %159 : vector<8x32xf32>
    %161 = arith.mulf %156, %160 : vector<8x32xf32>
    %c0_32 = arith.constant 0 : index
    %c0_33 = arith.constant 0 : index
    %c0_34 = arith.constant 0 : index
    %162 = vector.load %arg13[%c0_32, %c0_33, %c0_34] : memref<2x8x32xf32, #tpu.memory_space<vmem>>, vector<1x8x32xf32>
    %163 = vector.shape_cast %162 : vector<1x8x32xf32> to vector<8x32xf32>
    %164 = vector.shape_cast %161 : vector<8x32xf32> to vector<1x8x32xf32>
    tpu.vector_store %arg13[%c0_32, %c0_33, %c0_34], %164 {strides = array<i32>} : memref<2x8x32xf32, #tpu.memory_space<vmem>>, vector<1x8x32xf32>,
    %c0_35 = arith.constant 0 : index
    %c0_36 = arith.constant 0 : index
    %c0_37 = arith.constant 0 : index
    %165 = vector.load %arg14[%c0_35, %c0_36, %c0_37] : memref<2x8x32xf32, #tpu.memory_space<vmem>>, vector<1x8x32xf32>
    %166 = vector.shape_cast %165 : vector<1x8x32xf32> to vector<8x32xf32>
    %167 = vector.shape_cast %159 : vector<8x32xf32> to vector<1x8x32xf32>
    tpu.vector_store %arg14[%c0_35, %c0_36, %c0_37], %167 {strides = array<i32>} : memref<2x8x32xf32, #tpu.memory_space<vmem>>, vector<1x8x32xf32>,
    %168 = tpu.concatenate %35, %53, %71, %89, %107, %125, %143, %161 in 0 : vector<8x32xf32>, vector<8x32xf32>, vector<8x32xf32>, vector<8x32xf32>, vector<8x32xf32>, vector<8x32xf32>, vector<8x32xf32>, vector<8x32xf32> -> vector<64x32xf32>
    %c0_38 = arith.constant 0 : index
    %c0_39 = arith.constant 0 : index
    %169 = vector.load %arg7[%c0_38, %c0_39] : memref<32x128xf32, #tpu.memory_space<vmem>>, vector<32x128xf32>
    %c0_40 = arith.constant 0 : index
    %c0_41 = arith.constant 0 : index
    %170 = vector.load %arg8[%c0_40, %c0_41] : memref<32x128xf32, #tpu.memory_space<vmem>>, vector<32x128xf32>
    %c0_42 = arith.constant 0 : index
    %c0_43 = arith.constant 0 : index
    %171 = vector.load %arg9[%c0_42, %c0_43] : memref<1x128xf32, #tpu.memory_space<vmem>>, vector<1x128xf32>
    %cst_44 = arith.constant dense<0.000000e+00> : vector<64x128xf32>
    %172 = tpu.matmul %168, %169, %cst_44 {dimension_numbers = #tpu.dot_dimension_numbers<[1], [0], [0], [1], [0, 0, 1, 1], [], []>} : vector<64x32xf32>, vector<32x128xf32>, vector<64x128xf32> -> vector<64x128xf32>
    %173 = vector.broadcast %171 : vector<1x128xf32> to vector<64x128xf32>
    %174 = arith.addf %172, %173 : vector<64x128xf32>
    %c1 = arith.constant 1 : index
    %c0_45 = arith.constant 0 : index
    %c0_46 = arith.constant 0 : index
    %175 = vector.load %arg2[%c1, %c0_45, %c0_46] : memref<2x8x32xf32, #tpu.memory_space<vmem>>, vector<1x8x32xf32>
    %176 = vector.shape_cast %175 : vector<1x8x32xf32> to vector<8x32xf32>
    %c1_47 = arith.constant 1 : index
    %c0_48 = arith.constant 0 : index
    %c0_49 = arith.constant 0 : index
    %177 = vector.load %arg3[%c1_47, %c0_48, %c0_49] : memref<2x8x32xf32, #tpu.memory_space<vmem>>, vector<1x8x32xf32>
    %178 = vector.shape_cast %177 : vector<1x8x32xf32> to vector<8x32xf32>
    %179 = vector.extract_strided_slice %174 {offsets = [0, 0], sizes = [8, 128], strides = [1, 1]} : vector<64x128xf32> to vector<8x128xf32>
    %cst_50 = arith.constant dense<0.000000e+00> : vector<8x128xf32>
    %180 = tpu.matmul %176, %170, %cst_50 {dimension_numbers = #tpu.dot_dimension_numbers<[1], [0], [0], [1], [0, 0, 1, 1], [], []>} : vector<8x32xf32>, vector<32x128xf32>, vector<8x128xf32> -> vector<8x128xf32>
    %181 = arith.addf %179, %180 : vector<8x128xf32>
    %182 = arith.negf %181 : vector<8x128xf32>
    %183 = math.exp %182 : vector<8x128xf32>
    %cst_51 = arith.constant 1.000000e+00 : f32
    %184 = vector.broadcast %cst_51 : f32 to vector<8x128xf32>
    %185 = arith.addf %184, %183 : vector<8x128xf32>
    %186 = arith.divf %184, %185 : vector<8x128xf32>
    %187 = math.tanh %181 : vector<8x128xf32>
    %188 = vector.extract_strided_slice %186 {offsets = [0, 0], sizes = [8, 32], strides = [1, 1]} : vector<8x128xf32> to vector<8x32xf32>
    %189 = vector.extract_strided_slice %186 {offsets = [0, 32], sizes = [8, 32], strides = [1, 1]} : vector<8x128xf32> to vector<8x32xf32>
    %190 = vector.extract_strided_slice %187 {offsets = [0, 64], sizes = [8, 32], strides = [1, 1]} : vector<8x128xf32> to vector<8x32xf32>
    %191 = vector.extract_strided_slice %186 {offsets = [0, 96], sizes = [8, 32], strides = [1, 1]} : vector<8x128xf32> to vector<8x32xf32>
    %192 = arith.mulf %189, %178 : vector<8x32xf32>
    %193 = arith.mulf %188, %190 : vector<8x32xf32>
    %194 = arith.addf %192, %193 : vector<8x32xf32>
    %195 = math.tanh %194 : vector<8x32xf32>
    %196 = arith.mulf %191, %195 : vector<8x32xf32>
    %197 = vector.extract_strided_slice %174 {offsets = [8, 0], sizes = [8, 128], strides = [1, 1]} : vector<64x128xf32> to vector<8x128xf32>
    %cst_52 = arith.constant dense<0.000000e+00> : vector<8x128xf32>
    %198 = tpu.matmul %196, %170, %cst_52 {dimension_numbers = #tpu.dot_dimension_numbers<[1], [0], [0], [1], [0, 0, 1, 1], [], []>} : vector<8x32xf32>, vector<32x128xf32>, vector<8x128xf32> -> vector<8x128xf32>
    %199 = arith.addf %197, %198 : vector<8x128xf32>
    %200 = arith.negf %199 : vector<8x128xf32>
    %201 = math.exp %200 : vector<8x128xf32>
    %cst_53 = arith.constant 1.000000e+00 : f32
    %202 = vector.broadcast %cst_53 : f32 to vector<8x128xf32>
    %203 = arith.addf %202, %201 : vector<8x128xf32>
    %204 = arith.divf %202, %203 : vector<8x128xf32>
    %205 = math.tanh %199 : vector<8x128xf32>
    %206 = vector.extract_strided_slice %204 {offsets = [0, 0], sizes = [8, 32], strides = [1, 1]} : vector<8x128xf32> to vector<8x32xf32>
    %207 = vector.extract_strided_slice %204 {offsets = [0, 32], sizes = [8, 32], strides = [1, 1]} : vector<8x128xf32> to vector<8x32xf32>
    %208 = vector.extract_strided_slice %205 {offsets = [0, 64], sizes = [8, 32], strides = [1, 1]} : vector<8x128xf32> to vector<8x32xf32>
    %209 = vector.extract_strided_slice %204 {offsets = [0, 96], sizes = [8, 32], strides = [1, 1]} : vector<8x128xf32> to vector<8x32xf32>
    %210 = arith.mulf %207, %194 : vector<8x32xf32>
    %211 = arith.mulf %206, %208 : vector<8x32xf32>
    %212 = arith.addf %210, %211 : vector<8x32xf32>
    %213 = math.tanh %212 : vector<8x32xf32>
    %214 = arith.mulf %209, %213 : vector<8x32xf32>
    %215 = vector.extract_strided_slice %174 {offsets = [16, 0], sizes = [8, 128], strides = [1, 1]} : vector<64x128xf32> to vector<8x128xf32>
    %cst_54 = arith.constant dense<0.000000e+00> : vector<8x128xf32>
    %216 = tpu.matmul %214, %170, %cst_54 {dimension_numbers = #tpu.dot_dimension_numbers<[1], [0], [0], [1], [0, 0, 1, 1], [], []>} : vector<8x32xf32>, vector<32x128xf32>, vector<8x128xf32> -> vector<8x128xf32>
    %217 = arith.addf %215, %216 : vector<8x128xf32>
    %218 = arith.negf %217 : vector<8x128xf32>
    %219 = math.exp %218 : vector<8x128xf32>
    %cst_55 = arith.constant 1.000000e+00 : f32
    %220 = vector.broadcast %cst_55 : f32 to vector<8x128xf32>
    %221 = arith.addf %220, %219 : vector<8x128xf32>
    %222 = arith.divf %220, %221 : vector<8x128xf32>
    %223 = math.tanh %217 : vector<8x128xf32>
    %224 = vector.extract_strided_slice %222 {offsets = [0, 0], sizes = [8, 32], strides = [1, 1]} : vector<8x128xf32> to vector<8x32xf32>
    %225 = vector.extract_strided_slice %222 {offsets = [0, 32], sizes = [8, 32], strides = [1, 1]} : vector<8x128xf32> to vector<8x32xf32>
    %226 = vector.extract_strided_slice %223 {offsets = [0, 64], sizes = [8, 32], strides = [1, 1]} : vector<8x128xf32> to vector<8x32xf32>
    %227 = vector.extract_strided_slice %222 {offsets = [0, 96], sizes = [8, 32], strides = [1, 1]} : vector<8x128xf32> to vector<8x32xf32>
    %228 = arith.mulf %225, %212 : vector<8x32xf32>
    %229 = arith.mulf %224, %226 : vector<8x32xf32>
    %230 = arith.addf %228, %229 : vector<8x32xf32>
    %231 = math.tanh %230 : vector<8x32xf32>
    %232 = arith.mulf %227, %231 : vector<8x32xf32>
    %233 = vector.extract_strided_slice %174 {offsets = [24, 0], sizes = [8, 128], strides = [1, 1]} : vector<64x128xf32> to vector<8x128xf32>
    %cst_56 = arith.constant dense<0.000000e+00> : vector<8x128xf32>
    %234 = tpu.matmul %232, %170, %cst_56 {dimension_numbers = #tpu.dot_dimension_numbers<[1], [0], [0], [1], [0, 0, 1, 1], [], []>} : vector<8x32xf32>, vector<32x128xf32>, vector<8x128xf32> -> vector<8x128xf32>
    %235 = arith.addf %233, %234 : vector<8x128xf32>
    %236 = arith.negf %235 : vector<8x128xf32>
    %237 = math.exp %236 : vector<8x128xf32>
    %cst_57 = arith.constant 1.000000e+00 : f32
    %238 = vector.broadcast %cst_57 : f32 to vector<8x128xf32>
    %239 = arith.addf %238, %237 : vector<8x128xf32>
    %240 = arith.divf %238, %239 : vector<8x128xf32>
    %241 = math.tanh %235 : vector<8x128xf32>
    %242 = vector.extract_strided_slice %240 {offsets = [0, 0], sizes = [8, 32], strides = [1, 1]} : vector<8x128xf32> to vector<8x32xf32>
    %243 = vector.extract_strided_slice %240 {offsets = [0, 32], sizes = [8, 32], strides = [1, 1]} : vector<8x128xf32> to vector<8x32xf32>
    %244 = vector.extract_strided_slice %241 {offsets = [0, 64], sizes = [8, 32], strides = [1, 1]} : vector<8x128xf32> to vector<8x32xf32>
    %245 = vector.extract_strided_slice %240 {offsets = [0, 96], sizes = [8, 32], strides = [1, 1]} : vector<8x128xf32> to vector<8x32xf32>
    %246 = arith.mulf %243, %230 : vector<8x32xf32>
    %247 = arith.mulf %242, %244 : vector<8x32xf32>
    %248 = arith.addf %246, %247 : vector<8x32xf32>
    %249 = math.tanh %248 : vector<8x32xf32>
    %250 = arith.mulf %245, %249 : vector<8x32xf32>
    %251 = vector.extract_strided_slice %174 {offsets = [32, 0], sizes = [8, 128], strides = [1, 1]} : vector<64x128xf32> to vector<8x128xf32>
    %cst_58 = arith.constant dense<0.000000e+00> : vector<8x128xf32>
    %252 = tpu.matmul %250, %170, %cst_58 {dimension_numbers = #tpu.dot_dimension_numbers<[1], [0], [0], [1], [0, 0, 1, 1], [], []>} : vector<8x32xf32>, vector<32x128xf32>, vector<8x128xf32> -> vector<8x128xf32>
    %253 = arith.addf %251, %252 : vector<8x128xf32>
    %254 = arith.negf %253 : vector<8x128xf32>
    %255 = math.exp %254 : vector<8x128xf32>
    %cst_59 = arith.constant 1.000000e+00 : f32
    %256 = vector.broadcast %cst_59 : f32 to vector<8x128xf32>
    %257 = arith.addf %256, %255 : vector<8x128xf32>
    %258 = arith.divf %256, %257 : vector<8x128xf32>
    %259 = math.tanh %253 : vector<8x128xf32>
    %260 = vector.extract_strided_slice %258 {offsets = [0, 0], sizes = [8, 32], strides = [1, 1]} : vector<8x128xf32> to vector<8x32xf32>
    %261 = vector.extract_strided_slice %258 {offsets = [0, 32], sizes = [8, 32], strides = [1, 1]} : vector<8x128xf32> to vector<8x32xf32>
    %262 = vector.extract_strided_slice %259 {offsets = [0, 64], sizes = [8, 32], strides = [1, 1]} : vector<8x128xf32> to vector<8x32xf32>
    %263 = vector.extract_strided_slice %258 {offsets = [0, 96], sizes = [8, 32], strides = [1, 1]} : vector<8x128xf32> to vector<8x32xf32>
    %264 = arith.mulf %261, %248 : vector<8x32xf32>
    %265 = arith.mulf %260, %262 : vector<8x32xf32>
    %266 = arith.addf %264, %265 : vector<8x32xf32>
    %267 = math.tanh %266 : vector<8x32xf32>
    %268 = arith.mulf %263, %267 : vector<8x32xf32>
    %269 = vector.extract_strided_slice %174 {offsets = [40, 0], sizes = [8, 128], strides = [1, 1]} : vector<64x128xf32> to vector<8x128xf32>
    %cst_60 = arith.constant dense<0.000000e+00> : vector<8x128xf32>
    %270 = tpu.matmul %268, %170, %cst_60 {dimension_numbers = #tpu.dot_dimension_numbers<[1], [0], [0], [1], [0, 0, 1, 1], [], []>} : vector<8x32xf32>, vector<32x128xf32>, vector<8x128xf32> -> vector<8x128xf32>
    %271 = arith.addf %269, %270 : vector<8x128xf32>
    %272 = arith.negf %271 : vector<8x128xf32>
    %273 = math.exp %272 : vector<8x128xf32>
    %cst_61 = arith.constant 1.000000e+00 : f32
    %274 = vector.broadcast %cst_61 : f32 to vector<8x128xf32>
    %275 = arith.addf %274, %273 : vector<8x128xf32>
    %276 = arith.divf %274, %275 : vector<8x128xf32>
    %277 = math.tanh %271 : vector<8x128xf32>
    %278 = vector.extract_strided_slice %276 {offsets = [0, 0], sizes = [8, 32], strides = [1, 1]} : vector<8x128xf32> to vector<8x32xf32>
    %279 = vector.extract_strided_slice %276 {offsets = [0, 32], sizes = [8, 32], strides = [1, 1]} : vector<8x128xf32> to vector<8x32xf32>
    %280 = vector.extract_strided_slice %277 {offsets = [0, 64], sizes = [8, 32], strides = [1, 1]} : vector<8x128xf32> to vector<8x32xf32>
    %281 = vector.extract_strided_slice %276 {offsets = [0, 96], sizes = [8, 32], strides = [1, 1]} : vector<8x128xf32> to vector<8x32xf32>
    %282 = arith.mulf %279, %266 : vector<8x32xf32>
    %283 = arith.mulf %278, %280 : vector<8x32xf32>
    %284 = arith.addf %282, %283 : vector<8x32xf32>
    %285 = math.tanh %284 : vector<8x32xf32>
    %286 = arith.mulf %281, %285 : vector<8x32xf32>
    %287 = vector.extract_strided_slice %174 {offsets = [48, 0], sizes = [8, 128], strides = [1, 1]} : vector<64x128xf32> to vector<8x128xf32>
    %cst_62 = arith.constant dense<0.000000e+00> : vector<8x128xf32>
    %288 = tpu.matmul %286, %170, %cst_62 {dimension_numbers = #tpu.dot_dimension_numbers<[1], [0], [0], [1], [0, 0, 1, 1], [], []>} : vector<8x32xf32>, vector<32x128xf32>, vector<8x128xf32> -> vector<8x128xf32>
    %289 = arith.addf %287, %288 : vector<8x128xf32>
    %290 = arith.negf %289 : vector<8x128xf32>
    %291 = math.exp %290 : vector<8x128xf32>
    %cst_63 = arith.constant 1.000000e+00 : f32
    %292 = vector.broadcast %cst_63 : f32 to vector<8x128xf32>
    %293 = arith.addf %292, %291 : vector<8x128xf32>
    %294 = arith.divf %292, %293 : vector<8x128xf32>
    %295 = math.tanh %289 : vector<8x128xf32>
    %296 = vector.extract_strided_slice %294 {offsets = [0, 0], sizes = [8, 32], strides = [1, 1]} : vector<8x128xf32> to vector<8x32xf32>
    %297 = vector.extract_strided_slice %294 {offsets = [0, 32], sizes = [8, 32], strides = [1, 1]} : vector<8x128xf32> to vector<8x32xf32>
    %298 = vector.extract_strided_slice %295 {offsets = [0, 64], sizes = [8, 32], strides = [1, 1]} : vector<8x128xf32> to vector<8x32xf32>
    %299 = vector.extract_strided_slice %294 {offsets = [0, 96], sizes = [8, 32], strides = [1, 1]} : vector<8x128xf32> to vector<8x32xf32>
    %300 = arith.mulf %297, %284 : vector<8x32xf32>
    %301 = arith.mulf %296, %298 : vector<8x32xf32>
    %302 = arith.addf %300, %301 : vector<8x32xf32>
    %303 = math.tanh %302 : vector<8x32xf32>
    %304 = arith.mulf %299, %303 : vector<8x32xf32>
    %305 = vector.extract_strided_slice %174 {offsets = [56, 0], sizes = [8, 128], strides = [1, 1]} : vector<64x128xf32> to vector<8x128xf32>
    %cst_64 = arith.constant dense<0.000000e+00> : vector<8x128xf32>
    %306 = tpu.matmul %304, %170, %cst_64 {dimension_numbers = #tpu.dot_dimension_numbers<[1], [0], [0], [1], [0, 0, 1, 1], [], []>} : vector<8x32xf32>, vector<32x128xf32>, vector<8x128xf32> -> vector<8x128xf32>
    %307 = arith.addf %305, %306 : vector<8x128xf32>
    %308 = arith.negf %307 : vector<8x128xf32>
    %309 = math.exp %308 : vector<8x128xf32>
    %cst_65 = arith.constant 1.000000e+00 : f32
    %310 = vector.broadcast %cst_65 : f32 to vector<8x128xf32>
    %311 = arith.addf %310, %309 : vector<8x128xf32>
    %312 = arith.divf %310, %311 : vector<8x128xf32>
    %313 = math.tanh %307 : vector<8x128xf32>
    %314 = vector.extract_strided_slice %312 {offsets = [0, 0], sizes = [8, 32], strides = [1, 1]} : vector<8x128xf32> to vector<8x32xf32>
    %315 = vector.extract_strided_slice %312 {offsets = [0, 32], sizes = [8, 32], strides = [1, 1]} : vector<8x128xf32> to vector<8x32xf32>
    %316 = vector.extract_strided_slice %313 {offsets = [0, 64], sizes = [8, 32], strides = [1, 1]} : vector<8x128xf32> to vector<8x32xf32>
    %317 = vector.extract_strided_slice %312 {offsets = [0, 96], sizes = [8, 32], strides = [1, 1]} : vector<8x128xf32> to vector<8x32xf32>
    %318 = arith.mulf %315, %302 : vector<8x32xf32>
    %319 = arith.mulf %314, %316 : vector<8x32xf32>
    %320 = arith.addf %318, %319 : vector<8x32xf32>
    %321 = math.tanh %320 : vector<8x32xf32>
    %322 = arith.mulf %317, %321 : vector<8x32xf32>
    %c1_66 = arith.constant 1 : index
    %c0_67 = arith.constant 0 : index
    %c0_68 = arith.constant 0 : index
    %323 = vector.load %arg13[%c1_66, %c0_67, %c0_68] : memref<2x8x32xf32, #tpu.memory_space<vmem>>, vector<1x8x32xf32>
    %324 = vector.shape_cast %323 : vector<1x8x32xf32> to vector<8x32xf32>
    %325 = vector.shape_cast %322 : vector<8x32xf32> to vector<1x8x32xf32>
    tpu.vector_store %arg13[%c1_66, %c0_67, %c0_68], %325 {strides = array<i32>} : memref<2x8x32xf32, #tpu.memory_space<vmem>>, vector<1x8x32xf32>,
    %c1_69 = arith.constant 1 : index
    %c0_70 = arith.constant 0 : index
    %c0_71 = arith.constant 0 : index
    %326 = vector.load %arg14[%c1_69, %c0_70, %c0_71] : memref<2x8x32xf32, #tpu.memory_space<vmem>>, vector<1x8x32xf32>
    %327 = vector.shape_cast %326 : vector<1x8x32xf32> to vector<8x32xf32>
    %328 = vector.shape_cast %320 : vector<8x32xf32> to vector<1x8x32xf32>
    tpu.vector_store %arg14[%c1_69, %c0_70, %c0_71], %328 {strides = array<i32>} : memref<2x8x32xf32, #tpu.memory_space<vmem>>, vector<1x8x32xf32>,
    %c0_72 = arith.constant 0 : index
    %c0_73 = arith.constant 0 : index
    %329 = vector.load %arg10[%c0_72, %c0_73] : memref<32x1xf32, #tpu.memory_space<vmem>>, vector<32x1xf32>
    %cst_74 = arith.constant dense<0.000000e+00> : vector<8x1xf32>
    %330 = tpu.matmul %322, %329, %cst_74 {dimension_numbers = #tpu.dot_dimension_numbers<[1], [0], [0], [1], [0, 0, 1, 1], [], []>} : vector<8x32xf32>, vector<32x1xf32>, vector<8x1xf32> -> vector<8x1xf32>
    %c0_75 = arith.constant 0 : index
    %c0_76 = arith.constant 0 : index
    %331 = vector.load %arg11[%c0_75, %c0_76] : memref<1x1xf32, #tpu.memory_space<vmem>>, vector<1x1xf32>
    %332 = vector.broadcast %331 : vector<1x1xf32> to vector<8x1xf32>
    %333 = arith.addf %330, %332 : vector<8x1xf32>
    %334 = arith.negf %333 : vector<8x1xf32>
    %335 = math.exp %334 : vector<8x1xf32>
    %cst_77 = arith.constant 1.000000e+00 : f32
    %336 = vector.broadcast %cst_77 : f32 to vector<8x1xf32>
    %337 = arith.addf %336, %335 : vector<8x1xf32>
    %338 = arith.divf %336, %337 : vector<8x1xf32>
    %c0_78 = arith.constant 0 : index
    %c0_79 = arith.constant 0 : index
    %339 = vector.load %arg12[%c0_78, %c0_79] : memref<8x1xf32, #tpu.memory_space<vmem>>, vector<8x1xf32>
    tpu.vector_store %arg12[%c0_78, %c0_79], %338 {strides = array<i32>} : memref<8x1xf32, #tpu.memory_space<vmem>>, vector<8x1xf32>,
    return
  }
}

</mosaic_0001>

<llo_original>
// kernel: sentiment_rnn_forward.1
$region0: #{sentiment_rnn_forward.1}
  #allocation0 [shape = 'u32[]', space=smem, size = 0x4, offset = 0x4, fixed_abs, tag = 'smem constant byte address 0x4 - core index']
  #allocation1 [shape = 'u32[72,128]{1,0:T(1,128)}', space=vmem, size = 0x9000, scoped, tag = 'internal scratch']
  #allocation2 [shape = 'f32[1,1]{1,0:T(1,128)S(1)}', space=vmem, size = 0x200, scoped, tag = 'scoped memory for sentiment_rnn_forward.1']
  %s0 = inlined_call_operand.vmem [shape: s32[64,1], index: 0, kind: input, shape index: {}]
  %s1 = inlined_call_operand.vmem [shape: f32[64,32], index: 1, kind: input, shape index: {}]
  %s2 = inlined_call_operand.vmem [shape: f32[2,8,32], index: 2, kind: input, shape index: {}]
  %s3 = inlined_call_operand.vmem [shape: f32[2,8,32], index: 3, kind: input, shape index: {}]
  %s4 = inlined_call_operand.vmem [shape: f32[32,128], index: 4, kind: input, shape index: {}]
  %s5 = inlined_call_operand.vmem [shape: f32[32,128], index: 5, kind: input, shape index: {}]
  %s6 = inlined_call_operand.vmem [shape: f32[1,128], index: 6, kind: input, shape index: {}]
  %s7 = inlined_call_operand.vmem [shape: f32[32,128], index: 7, kind: input, shape index: {}]
  %s8 = inlined_call_operand.vmem [shape: f32[32,128], index: 8, kind: input, shape index: {}]
  %s9 = inlined_call_operand.vmem [shape: f32[1,128], index: 9, kind: input, shape index: {}]
  %s10 = inlined_call_operand.vmem [shape: f32[32,1], index: 10, kind: input, shape index: {}]
  %s11 = inlined_call_operand.<no memory space> [shape: f32[1,1], index: 11, kind: input, shape index: {}]
  %s12 = inlined_call_operand.vmem [shape: f32[8,1], index: 12, kind: output, shape index: {0}]
  %s13 = inlined_call_operand.vmem [shape: f32[2,8,32], index: 13, kind: output, shape index: {1}]
  %s14 = inlined_call_operand.vmem [shape: f32[2,8,32], index: 14, kind: output, shape index: {2}]
  %15 = xla_tuple %s12, %s13, %s14
  %s16 = sld [smem:[#allocation0]]
  $region74: #{sentiment_rnn_forward.1} parent=0
    _
  %s18 = ssub.s32 1, %s16
  %s19 = scalar_select 0, %s18, %s16
  %v20 = vstv %s11
  %21 = vst [vmem:[#allocation2] sm:$0x1] %v20
  // Predicated region
  $region2: #{sentiment_rnn_forward.1} parent=0 // pred_check
    _
  $region3: #{sentiment_rnn_forward.1} parent=0 // pred_check_branch
    %23 = sbr.rel (0) target = $region5
  $region4: #{sentiment_rnn_forward.1} parent=0 // pred_region
    _
  $region5: #{sentiment_rnn_forward.1} parent=0 // pred_fallthru
    _
  // Predicated region
  $region6: #{sentiment_rnn_forward.1} parent=0 // pred_check
    _
  $region7: #{sentiment_rnn_forward.1} parent=0 // pred_check_branch
    %25 = sbr.rel (0) target = $region9
  $region8: #{sentiment_rnn_forward.1} parent=0 // pred_region
    _
  $region9: #{sentiment_rnn_forward.1} parent=0 // pred_fallthru
    _
  // Predicated region
  $region10: #{sentiment_rnn_forward.1} parent=0 // pred_check
    _
  $region11: #{sentiment_rnn_forward.1} parent=0 // pred_check_branch
    %27 = sbr.rel (0) target = $region13
  $region12: #{sentiment_rnn_forward.1} parent=0 // pred_region
    _
  $region13: #{sentiment_rnn_forward.1} parent=0 // pred_fallthru
    _
  // Predicated region
  $region14: #{sentiment_rnn_forward.1} parent=0 // pred_check
    _
  $region15: #{sentiment_rnn_forward.1} parent=0 // pred_check_branch
    %29 = sbr.rel (0) target = $region17
  $region16: #{sentiment_rnn_forward.1} parent=0 // pred_region
    _
  $region17: #{sentiment_rnn_forward.1} parent=0 // pred_fallthru
    _
  // Predicated region
  $region18: #{sentiment_rnn_forward.1} parent=0 // pred_check
    _
  $region19: #{sentiment_rnn_forward.1} parent=0 // pred_check_branch
    %31 = sbr.rel (0) target = $region21
  $region20: #{sentiment_rnn_forward.1} parent=0 // pred_region
    _
  $region21: #{sentiment_rnn_forward.1} parent=0 // pred_fallthru
    _
  // Predicated region
  $region22: #{sentiment_rnn_forward.1} parent=0 // pred_check
    _
  $region23: #{sentiment_rnn_forward.1} parent=0 // pred_check_branch
    %33 = sbr.rel (0) target = $region25
  $region24: #{sentiment_rnn_forward.1} parent=0 // pred_region
    _
  $region25: #{sentiment_rnn_forward.1} parent=0 // pred_fallthru
    _
  // Predicated region
  $region26: #{sentiment_rnn_forward.1} parent=0 // pred_check
    _
  $region27: #{sentiment_rnn_forward.1} parent=0 // pred_check_branch
    %35 = sbr.rel (0) target = $region29
  $region28: #{sentiment_rnn_forward.1} parent=0 // pred_region
    _
  $region29: #{sentiment_rnn_forward.1} parent=0 // pred_fallthru
    _
  // Predicated region
  $region30: #{sentiment_rnn_forward.1} parent=0 // pred_check
    _
  $region31: #{sentiment_rnn_forward.1} parent=0 // pred_check_branch
    %37 = sbr.rel (0) target = $region33
  $region32: #{sentiment_rnn_forward.1} parent=0 // pred_region
    _
  $region33: #{sentiment_rnn_forward.1} parent=0 // pred_fallthru
    _
  // Predicated region
  $region34: #{sentiment_rnn_forward.1} parent=0 // pred_check
    _
  $region35: #{sentiment_rnn_forward.1} parent=0 // pred_check_branch
    %39 = sbr.rel (0) target = $region37
  $region36: #{sentiment_rnn_forward.1} parent=0 // pred_region
    _
  $region37: #{sentiment_rnn_forward.1} parent=0 // pred_fallthru
    _
  // Predicated region
  $region38: #{sentiment_rnn_forward.1} parent=0 // pred_check
    _
  $region39: #{sentiment_rnn_forward.1} parent=0 // pred_check_branch
    %41 = sbr.rel (0) target = $region41
  $region40: #{sentiment_rnn_forward.1} parent=0 // pred_region
    _
  $region41: #{sentiment_rnn_forward.1} parent=0 // pred_fallthru
    _
  // Predicated region
  $region42: #{sentiment_rnn_forward.1} parent=0 // pred_check
    _
  $region43: #{sentiment_rnn_forward.1} parent=0 // pred_check_branch
    %43 = sbr.rel (0) target = $region45
  $region44: #{sentiment_rnn_forward.1} parent=0 // pred_region
    _
  $region45: #{sentiment_rnn_forward.1} parent=0 // pred_fallthru
    _
  // Predicated region
  $region46: #{sentiment_rnn_forward.1} parent=0 // pred_check
    _
  $region47: #{sentiment_rnn_forward.1} parent=0 // pred_check_branch
    %45 = sbr.rel (0) target = $region49
  $region48: #{sentiment_rnn_forward.1} parent=0 // pred_region
    _
  $region49: #{sentiment_rnn_forward.1} parent=0 // pred_fallthru
    _
  %v46 = vld [vmem:[%s0] sm:$0xff]
  %v47 = vld [vmem:[%s0 + $0x8] sm:$0xff]
  %v48 = vld [vmem:[%s0 + $0x10] sm:$0xff]
  %v49 = vld [vmem:[%s0 + $0x18] sm:$0xff]
  %v50 = vld [vmem:[%s0 + $0x20] sm:$0xff]
  %v51 = vld [vmem:[%s0 + $0x28] sm:$0xff]
  %v52 = vld [vmem:[%s0 + $0x30] sm:$0xff]
  %v53 = vld [vmem:[%s0 + $0x38] sm:$0xff]
  %v54 = vlaneseq
  %v55 = vand.u32 %v54, 127
  %56 = vset.pattern.permute.xlu0 0
  %57 = vperm.xlu0 %56, %v46
  %v58 = vpop.permute.xlu0 %57
  %59 = vset.pattern.permute.xlu0 0
  %60 = vperm.xlu0 %59, %v47
  %v61 = vpop.permute.xlu0 %60
  %62 = vset.pattern.permute.xlu0 0
  %63 = vperm.xlu0 %62, %v48
  %v64 = vpop.permute.xlu0 %63
  %65 = vset.pattern.permute.xlu0 0
  %66 = vperm.xlu0 %65, %v49
  %v67 = vpop.permute.xlu0 %66
  %68 = vset.pattern.permute.xlu0 0
  %69 = vperm.xlu0 %68, %v50
  %v70 = vpop.permute.xlu0 %69
  %71 = vset.pattern.permute.xlu0 0
  %72 = vperm.xlu0 %71, %v51
  %v73 = vpop.permute.xlu0 %72
  %74 = vset.pattern.permute.xlu0 0
  %75 = vperm.xlu0 %74, %v52
  %v76 = vpop.permute.xlu0 %75
  %77 = vset.pattern.permute.xlu0 0
  %78 = vperm.xlu0 %77, %v53
  %v79 = vpop.permute.xlu0 %78
  %vm80 = vcmp.eq.s32.totalorder %v58, %v55
  %vm81 = vcmp.eq.s32.totalorder %v61, %v55
  %vm82 = vcmp.eq.s32.totalorder %v64, %v55
  %vm83 = vcmp.eq.s32.totalorder %v67, %v55
  %vm84 = vcmp.eq.s32.totalorder %v70, %v55
  %vm85 = vcmp.eq.s32.totalorder %v73, %v55
  %vm86 = vcmp.eq.s32.totalorder %v76, %v55
  %vm87 = vcmp.eq.s32.totalorder %v79, %v55
  %v88 = vsel %vm80, 1, 0
  %v89 = vsel %vm81, 1, 0
  %v90 = vsel %vm82, 1, 0
  %v91 = vsel %vm83, 1, 0
  %v92 = vsel %vm84, 1, 0
  %v93 = vsel %vm85, 1, 0
  %v94 = vsel %vm86, 1, 0
  %v95 = vsel %vm87, 1, 0
  %v96 = vcvt.s32.f32 %v88
  %v97 = vcvt.s32.f32 %v89
  %v98 = vcvt.s32.f32 %v90
  %v99 = vcvt.s32.f32 %v91
  %v100 = vcvt.s32.f32 %v92
  %v101 = vcvt.s32.f32 %v93
  %v102 = vcvt.s32.f32 %v94
  %v103 = vcvt.s32.f32 %v95
  %v104 = vld [vmem:[%s1] sm:$0xff]
  %v105 = vld [vmem:[%s1 + $0x8] sm:$0xff]
  %v106 = vld [vmem:[%s1 + $0x10] sm:$0xff]
  %v107 = vld [vmem:[%s1 + $0x18] sm:$0xff]
  %v108 = vld [vmem:[%s1 + $0x20] sm:$0xff]
  %v109 = vld [vmem:[%s1 + $0x28] sm:$0xff]
  %v110 = vld [vmem:[%s1 + $0x30] sm:$0xff]
  %v111 = vld [vmem:[%s1 + $0x38] sm:$0xff]
  %vm112 = vcmask 523264
  %v114 = vsel %vm112, %v96, 0
  %v117 = vsel %vm112, %v97, 0
  %v120 = vsel %vm112, %v98, 0
  %v123 = vsel %vm112, %v99, 0
  %v126 = vsel %vm112, %v100, 0
  %v129 = vsel %vm112, %v101, 0
  %v132 = vsel %vm112, %v102, 0
  %v135 = vsel %vm112, %v103, 0
  %137 = vmatpush.msra.mxu0 0.0
  %138 = vmatpush.msra.mxu0 0.0
  %139 = vmatpush.msra.mxu0 0.0
  %140 = vmatpush.msra.mxu0 0.0
  %141 = vmatpush.msra.mxu0 0.0
  %142 = vmatpush.msra.mxu0 0.0
  %143 = vmatpush.msra.mxu0 0.0
  %144 = vmatpush.msra.mxu0 0.0
  %145 = vmatpush.msra.mxu0 %v111
  %146 = vmatpush.msra.mxu0 %v110
  %147 = vmatpush.msra.mxu0 %v109
  %148 = vmatpush.msra.mxu0 %v108
  %149 = vmatpush.msra.mxu0 %v107
  %150 = vmatpush.msra.mxu0 %v106
  %151 = vmatpush.msra.mxu0 %v105
  %152 = vmatpush.msra.mxu0 %v104
  %153 = vmatmul.f32.gmra.mxu0 %v114
  %v154 = vpop.f32.mrf.mxu0
  %v155 = vadd.f32 0.0, %v154
  %156 = vmatmul.f32.gmra.mxu0 %v117
  %v157 = vpop.f32.mrf.mxu0
  %v158 = vadd.f32 0.0, %v157
  %159 = vmatmul.f32.gmra.mxu0 %v120
  %v160 = vpop.f32.mrf.mxu0
  %v161 = vadd.f32 0.0, %v160
  %162 = vmatmul.f32.gmra.mxu0 %v123
  %v163 = vpop.f32.mrf.mxu0
  %v164 = vadd.f32 0.0, %v163
  %165 = vmatmul.f32.gmra.mxu0 %v126
  %v166 = vpop.f32.mrf.mxu0
  %v167 = vadd.f32 0.0, %v166
  %168 = vmatmul.f32.gmra.mxu0 %v129
  %v169 = vpop.f32.mrf.mxu0
  %v170 = vadd.f32 0.0, %v169
  %171 = vmatmul.f32.gmra.mxu0 %v132
  %v172 = vpop.f32.mrf.mxu0
  %v173 = vadd.f32 0.0, %v172
  %174 = vmatmul.f32.gmra.mxu0 %v135
  %v175 = vpop.f32.mrf.mxu0
  %v176 = vadd.f32 0.0, %v175
  %177 = vdwg.mxu0
  %v178 = vld [vmem:[%s4] sm:$0xff]
  %v179 = vld [vmem:[%s4 + $0x8] sm:$0xff]
  %v180 = vld [vmem:[%s4 + $0x10] sm:$0xff]
  %v181 = vld [vmem:[%s4 + $0x18] sm:$0xff]
  %v182 = vld [vmem:[%s5] sm:$0xff]
  %v183 = vld [vmem:[%s5 + $0x8] sm:$0xff]
  %v184 = vld [vmem:[%s5 + $0x10] sm:$0xff]
  %v185 = vld [vmem:[%s5 + $0x18] sm:$0xff]
  %v186 = vld [vmem:[%s6] sm:$0x1]
  %v188 = vperm.slane %v186, 0
  %vm190 = vcmask 261120
  %v192 = vsel %vm190, %v155, 0
  %v195 = vsel %vm190, %v158, 0
  %v198 = vsel %vm190, %v161, 0
  %v201 = vsel %vm190, %v164, 0
  %v204 = vsel %vm190, %v167, 0
  %v207 = vsel %vm190, %v170, 0
  %v210 = vsel %vm190, %v173, 0
  %v213 = vsel %vm190, %v176, 0
  %215 = vmatpush.msra.mxu0 0.0
  %216 = vmatpush.msra.mxu0 0.0
  %217 = vmatpush.msra.mxu0 0.0
  %218 = vmatpush.msra.mxu0 0.0
  %219 = vmatpush.msra.mxu0 0.0
  %220 = vmatpush.msra.mxu0 0.0
  %221 = vmatpush.msra.mxu0 0.0
  %222 = vmatpush.msra.mxu0 0.0
  %223 = vmatpush.msra.mxu0 0.0
  %224 = vmatpush.msra.mxu0 0.0
  %225 = vmatpush.msra.mxu0 0.0
  %226 = vmatpush.msra.mxu0 0.0
  %227 = vmatpush.msra.mxu0 %v181
  %228 = vmatpush.msra.mxu0 %v180
  %229 = vmatpush.msra.mxu0 %v179
  %230 = vmatpush.msra.mxu0 %v178
  %231 = vmatmul.f32.gmra.mxu0 %v192
  %v232 = vpop.f32.mrf.mxu0
  %v233 = vadd.f32 %v188, %v232
  %234 = vmatmul.f32.gmra.mxu0 %v195
  %v235 = vpop.f32.mrf.mxu0
  %v236 = vadd.f32 %v188, %v235
  %237 = vmatmul.f32.gmra.mxu0 %v198
  %v238 = vpop.f32.mrf.mxu0
  %v239 = vadd.f32 %v188, %v238
  %240 = vmatmul.f32.gmra.mxu0 %v201
  %v241 = vpop.f32.mrf.mxu0
  %v242 = vadd.f32 %v188, %v241
  %243 = vmatmul.f32.gmra.mxu0 %v204
  %v244 = vpop.f32.mrf.mxu0
  %v245 = vadd.f32 %v188, %v244
  %246 = vmatmul.f32.gmra.mxu0 %v207
  %v247 = vpop.f32.mrf.mxu0
  %v248 = vadd.f32 %v188, %v247
  %249 = vmatmul.f32.gmra.mxu0 %v210
  %v250 = vpop.f32.mrf.mxu0
  %v251 = vadd.f32 %v188, %v250
  %252 = vmatmul.f32.gmra.mxu0 %v213
  %v253 = vpop.f32.mrf.mxu0
  %v254 = vadd.f32 %v188, %v253
  %255 = vdwg.mxu0
  %v256 = vld [vmem:[%s2] sm:$0xff]
  %v257 = vld [vmem:[%s3] sm:$0xff]
  %v259 = vsel %vm190, %v256, 0
  %261 = vmatpush.msra.mxu0 0.0
  %262 = vmatpush.msra.mxu0 0.0
  %263 = vmatpush.msra.mxu0 0.0
  %264 = vmatpush.msra.mxu0 0.0
  %265 = vmatpush.msra.mxu0 0.0
  %266 = vmatpush.msra.mxu0 0.0
  %267 = vmatpush.msra.mxu0 0.0
  %268 = vmatpush.msra.mxu0 0.0
  %269 = vmatpush.msra.mxu0 0.0
  %270 = vmatpush.msra.mxu0 0.0
  %271 = vmatpush.msra.mxu0 0.0
  %272 = vmatpush.msra.mxu0 0.0
  %273 = vmatpush.msra.mxu0 %v185
  %274 = vmatpush.msra.mxu0 %v184
  %275 = vmatpush.msra.mxu0 %v183
  %276 = vmatpush.msra.mxu0 %v182
  %277 = vmatmul.f32.gmra.mxu0 %v259
  %v278 = vpop.f32.mrf.mxu0
  %v279 = vadd.f32 0.0, %v278
  %280 = vdwg.mxu0
  %v281 = vadd.f32 %v233, %v279
  %v282 = vxor.u32 %v281, 2147483648
  %v283 = vmul.f32 %v282, 1.442695
  %v284 = vpow.pop %v283
  %v285 = vadd.f32 %v284, 1.0
  %v286 = vrcp.pop %v285
  %v287 = vmul.f32 %v285, %v286
  %v288 = vsub.f32 1.0, %v287
  %v289 = vmul.f32 %v286, %v288
  %v290 = vadd.f32 %v286, %v289
  %vm291 = vweird.f32 %v285
  %vm292 = vweird.f32 %v286
  %vm293 = vmor %vm291, %vm292
  %v294 = vsel %vm293, %v286, %v290
  %v295 = vand.u32 2147483647, %v285
  %vm296 = vcmp.eq.f32.partialorder %v295, 8.507059e+37
  %v297 = vand.u32 %v285, 2147483648
  %v298 = vor.u32 1.1754944e-38, %v297
  %v299 = vsel %vm296, %v298, %v294
  %v300 = vmul.f32 1.0, %v299
  %v301 = vtanh.pop %v281
  %303 = vrot.lane.b32.xlu0 %v257, 32
  %v304 = vpop.permute.xlu0 %303
  %v306 = vmul.f32 %v300, %v304
  %308 = vrot.lane.b32.xlu0 %v301, 64
  %v309 = vpop.permute.xlu0 %308
  %v311 = vmul.f32 %v300, %v309
  %313 = vrot.lane.b32.xlu0 %v311, 32
  %v314 = vpop.permute.xlu0 %313
  %v316 = vadd.f32 %v306, %v314
  %v317 = vtanh.pop %v316
  %319 = vrot.lane.b32.xlu0 %v317, 64
  %v320 = vpop.permute.xlu0 %319
  %v322 = vmul.f32 %v300, %v320
  %324 = vrot.lane.b32.xlu0 %v322, 32
  %v325 = vpop.permute.xlu0 %324
  %v326 = vsel %vm190, %v325, 0
  %328 = vmatpush.msra.mxu0 0.0
  %329 = vmatpush.msra.mxu0 0.0
  %330 = vmatpush.msra.mxu0 0.0
  %331 = vmatpush.msra.mxu0 0.0
  %332 = vmatpush.msra.mxu0 0.0
  %333 = vmatpush.msra.mxu0 0.0
  %334 = vmatpush.msra.mxu0 0.0
  %335 = vmatpush.msra.mxu0 0.0
  %336 = vmatpush.msra.mxu0 0.0
  %337 = vmatpush.msra.mxu0 0.0
  %338 = vmatpush.msra.mxu0 0.0
  %339 = vmatpush.msra.mxu0 0.0
  %340 = vmatpush.msra.mxu0 %v185
  %341 = vmatpush.msra.mxu0 %v184
  %342 = vmatpush.msra.mxu0 %v183
  %343 = vmatpush.msra.mxu0 %v182
  %344 = vmatmul.f32.gmra.mxu0 %v326
  %v345 = vpop.f32.mrf.mxu0
  %v346 = vadd.f32 0.0, %v345
  %347 = vdwg.mxu0
  %v348 = vadd.f32 %v236, %v346
  %v349 = vxor.u32 %v348, 2147483648
  %v350 = vmul.f32 %v349, 1.442695
  %v351 = vpow.pop %v350
  %v352 = vadd.f32 %v351, 1.0
  %v353 = vrcp.pop %v352
  %v354 = vmul.f32 %v352, %v353
  %v355 = vsub.f32 1.0, %v354
  %v356 = vmul.f32 %v353, %v355
  %v357 = vadd.f32 %v353, %v356
  %vm358 = vweird.f32 %v352
  %vm359 = vweird.f32 %v353
  %vm360 = vmor %vm358, %vm359
  %v361 = vsel %vm360, %v353, %v357
  %v362 = vand.u32 2147483647, %v352
  %vm363 = vcmp.eq.f32.partialorder %v362, 8.507059e+37
  %v364 = vand.u32 %v352, 2147483648
  %v365 = vor.u32 1.1754944e-38, %v364
  %v366 = vsel %vm363, %v365, %v361
  %v367 = vmul.f32 1.0, %v366
  %v368 = vtanh.pop %v348
  %v369 = vmul.f32 %v367, %v316
  %371 = vrot.lane.b32.xlu0 %v368, 64
  %v372 = vpop.permute.xlu0 %371
  %v374 = vmul.f32 %v367, %v372
  %376 = vrot.lane.b32.xlu0 %v374, 32
  %v377 = vpop.permute.xlu0 %376
  %v379 = vadd.f32 %v369, %v377
  %v380 = vtanh.pop %v379
  %382 = vrot.lane.b32.xlu0 %v380, 64
  %v383 = vpop.permute.xlu0 %382
  %v385 = vmul.f32 %v367, %v383
  %387 = vrot.lane.b32.xlu0 %v385, 32
  %v388 = vpop.permute.xlu0 %387
  %v389 = vsel %vm190, %v388, 0
  %391 = vmatpush.msra.mxu0 0.0
  %392 = vmatpush.msra.mxu0 0.0
  %393 = vmatpush.msra.mxu0 0.0
  %394 = vmatpush.msra.mxu0 0.0
  %395 = vmatpush.msra.mxu0 0.0
  %396 = vmatpush.msra.mxu0 0.0
  %397 = vmatpush.msra.mxu0 0.0
  %398 = vmatpush.msra.mxu0 0.0
  %399 = vmatpush.msra.mxu0 0.0
  %400 = vmatpush.msra.mxu0 0.0
  %401 = vmatpush.msra.mxu0 0.0
  %402 = vmatpush.msra.mxu0 0.0
  %403 = vmatpush.msra.mxu0 %v185
  %404 = vmatpush.msra.mxu0 %v184
  %405 = vmatpush.msra.mxu0 %v183
  %406 = vmatpush.msra.mxu0 %v182
  %407 = vmatmul.f32.gmra.mxu0 %v389
  %v408 = vpop.f32.mrf.mxu0
  %v409 = vadd.f32 0.0, %v408
  %410 = vdwg.mxu0
  %v411 = vadd.f32 %v239, %v409
  %v412 = vxor.u32 %v411, 2147483648
  %v413 = vmul.f32 %v412, 1.442695
  %v414 = vpow.pop %v413
  %v415 = vadd.f32 %v414, 1.0
  %v416 = vrcp.pop %v415
  %v417 = vmul.f32 %v415, %v416
  %v418 = vsub.f32 1.0, %v417
  %v419 = vmul.f32 %v416, %v418
  %v420 = vadd.f32 %v416, %v419
  %vm421 = vweird.f32 %v415
  %vm422 = vweird.f32 %v416
  %vm423 = vmor %vm421, %vm422
  %v424 = vsel %vm423, %v416, %v420
  %v425 = vand.u32 2147483647, %v415
  %vm426 = vcmp.eq.f32.partialorder %v425, 8.507059e+37
  %v427 = vand.u32 %v415, 2147483648
  %v428 = vor.u32 1.1754944e-38, %v427
  %v429 = vsel %vm426, %v428, %v424
  %v430 = vmul.f32 1.0, %v429
  %v431 = vtanh.pop %v411
  %v432 = vmul.f32 %v430, %v379
  %434 = vrot.lane.b32.xlu0 %v431, 64
  %v435 = vpop.permute.xlu0 %434
  %v437 = vmul.f32 %v430, %v435
  %439 = vrot.lane.b32.xlu0 %v437, 32
  %v440 = vpop.permute.xlu0 %439
  %v442 = vadd.f32 %v432, %v440
  %v443 = vtanh.pop %v442
  %445 = vrot.lane.b32.xlu0 %v443, 64
  %v446 = vpop.permute.xlu0 %445
  %v448 = vmul.f32 %v430, %v446
  %450 = vrot.lane.b32.xlu0 %v448, 32
  %v451 = vpop.permute.xlu0 %450
  %v452 = vsel %vm190, %v451, 0
  %454 = vmatpush.msra.mxu0 0.0
  %455 = vmatpush.msra.mxu0 0.0
  %456 = vmatpush.msra.mxu0 0.0
  %457 = vmatpush.msra.mxu0 0.0
  %458 = vmatpush.msra.mxu0 0.0
  %459 = vmatpush.msra.mxu0 0.0
  %460 = vmatpush.msra.mxu0 0.0
  %461 = vmatpush.msra.mxu0 0.0
  %462 = vmatpush.msra.mxu0 0.0
  %463 = vmatpush.msra.mxu0 0.0
  %464 = vmatpush.msra.mxu0 0.0
  %465 = vmatpush.msra.mxu0 0.0
  %466 = vmatpush.msra.mxu0 %v185
  %467 = vmatpush.msra.mxu0 %v184
  %468 = vmatpush.msra.mxu0 %v183
  %469 = vmatpush.msra.mxu0 %v182
  %470 = vmatmul.f32.gmra.mxu0 %v452
  %v471 = vpop.f32.mrf.mxu0
  %v472 = vadd.f32 0.0, %v471
  %473 = vdwg.mxu0
  %v474 = vadd.f32 %v242, %v472
  %v475 = vxor.u32 %v474, 2147483648
  %v476 = vmul.f32 %v475, 1.442695
  %v477 = vpow.pop %v476
  %v478 = vadd.f32 %v477, 1.0
  %v479 = vrcp.pop %v478
  %v480 = vmul.f32 %v478, %v479
  %v481 = vsub.f32 1.0, %v480
  %v482 = vmul.f32 %v479, %v481
  %v483 = vadd.f32 %v479, %v482
  %vm484 = vweird.f32 %v478
  %vm485 = vweird.f32 %v479
  %vm486 = vmor %vm484, %vm485
  %v487 = vsel %vm486, %v479, %v483
  %v488 = vand.u32 2147483647, %v478
  %vm489 = vcmp.eq.f32.partialorder %v488, 8.507059e+37
  %v490 = vand.u32 %v478, 2147483648
  %v491 = vor.u32 1.1754944e-38, %v490
  %v492 = vsel %vm489, %v491, %v487
  %v493 = vmul.f32 1.0, %v492
  %v494 = vtanh.pop %v474
  %v495 = vmul.f32 %v493, %v442
  %497 = vrot.lane.b32.xlu0 %v494, 64
  %v498 = vpop.permute.xlu0 %497
  %v500 = vmul.f32 %v493, %v498
  %502 = vrot.lane.b32.xlu0 %v500, 32
  %v503 = vpop.permute.xlu0 %502
  %v505 = vadd.f32 %v495, %v503
  %v506 = vtanh.pop %v505
  %508 = vrot.lane.b32.xlu0 %v506, 64
  %v509 = vpop.permute.xlu0 %508
  %v511 = vmul.f32 %v493, %v509
  %513 = vrot.lane.b32.xlu0 %v511, 32
  %v514 = vpop.permute.xlu0 %513
  %v515 = vsel %vm190, %v514, 0
  %517 = vmatpush.msra.mxu0 0.0
  %518 = vmatpush.msra.mxu0 0.0
  %519 = vmatpush.msra.mxu0 0.0
  %520 = vmatpush.msra.mxu0 0.0
  %521 = vmatpush.msra.mxu0 0.0
  %522 = vmatpush.msra.mxu0 0.0
  %523 = vmatpush.msra.mxu0 0.0
  %524 = vmatpush.msra.mxu0 0.0
  %525 = vmatpush.msra.mxu0 0.0
  %526 = vmatpush.msra.mxu0 0.0
  %527 = vmatpush.msra.mxu0 0.0
  %528 = vmatpush.msra.mxu0 0.0
  %529 = vmatpush.msra.mxu0 %v185
  %530 = vmatpush.msra.mxu0 %v184
  %531 = vmatpush.msra.mxu0 %v183
  %532 = vmatpush.msra.mxu0 %v182
  %533 = vmatmul.f32.gmra.mxu0 %v515
  %v534 = vpop.f32.mrf.mxu0
  %v535 = vadd.f32 0.0, %v534
  %536 = vdwg.mxu0
  %v537 = vadd.f32 %v245, %v535
  %v538 = vxor.u32 %v537, 2147483648
  %v539 = vmul.f32 %v538, 1.442695
  %v540 = vpow.pop %v539
  %v541 = vadd.f32 %v540, 1.0
  %v542 = vrcp.pop %v541
  %v543 = vmul.f32 %v541, %v542
  %v544 = vsub.f32 1.0, %v543
  %v545 = vmul.f32 %v542, %v544
  %v546 = vadd.f32 %v542, %v545
  %vm547 = vweird.f32 %v541
  %vm548 = vweird.f32 %v542
  %vm549 = vmor %vm547, %vm548
  %v550 = vsel %vm549, %v542, %v546
  %v551 = vand.u32 2147483647, %v541
  %vm552 = vcmp.eq.f32.partialorder %v551, 8.507059e+37
  %v553 = vand.u32 %v541, 2147483648
  %v554 = vor.u32 1.1754944e-38, %v553
  %v555 = vsel %vm552, %v554, %v550
  %v556 = vmul.f32 1.0, %v555
  %v557 = vtanh.pop %v537
  %v558 = vmul.f32 %v556, %v505
  %560 = vrot.lane.b32.xlu0 %v557, 64
  %v561 = vpop.permute.xlu0 %560
  %v563 = vmul.f32 %v556, %v561
  %565 = vrot.lane.b32.xlu0 %v563, 32
  %v566 = vpop.permute.xlu0 %565
  %v568 = vadd.f32 %v558, %v566
  %v569 = vtanh.pop %v568
  %571 = vrot.lane.b32.xlu0 %v569, 64
  %v572 = vpop.permute.xlu0 %571
  %v574 = vmul.f32 %v556, %v572
  %576 = vrot.lane.b32.xlu0 %v574, 32
  %v577 = vpop.permute.xlu0 %576
  %v578 = vsel %vm190, %v577, 0
  %580 = vmatpush.msra.mxu0 0.0
  %581 = vmatpush.msra.mxu0 0.0
  %582 = vmatpush.msra.mxu0 0.0
  %583 = vmatpush.msra.mxu0 0.0
  %584 = vmatpush.msra.mxu0 0.0
  %585 = vmatpush.msra.mxu0 0.0
  %586 = vmatpush.msra.mxu0 0.0
  %587 = vmatpush.msra.mxu0 0.0
  %588 = vmatpush.msra.mxu0 0.0
  %589 = vmatpush.msra.mxu0 0.0
  %590 = vmatpush.msra.mxu0 0.0
  %591 = vmatpush.msra.mxu0 0.0
  %592 = vmatpush.msra.mxu0 %v185
  %593 = vmatpush.msra.mxu0 %v184
  %594 = vmatpush.msra.mxu0 %v183
  %595 = vmatpush.msra.mxu0 %v182
  %596 = vmatmul.f32.gmra.mxu0 %v578
  %v597 = vpop.f32.mrf.mxu0
  %v598 = vadd.f32 0.0, %v597
  %599 = vdwg.mxu0
  %v600 = vadd.f32 %v248, %v598
  %v601 = vxor.u32 %v600, 2147483648
  %v602 = vmul.f32 %v601, 1.442695
  %v603 = vpow.pop %v602
  %v604 = vadd.f32 %v603, 1.0
  %v605 = vrcp.pop %v604
  %v606 = vmul.f32 %v604, %v605
  %v607 = vsub.f32 1.0, %v606
  %v608 = vmul.f32 %v605, %v607
  %v609 = vadd.f32 %v605, %v608
  %vm610 = vweird.f32 %v604
  %vm611 = vweird.f32 %v605
  %vm612 = vmor %vm610, %vm611
  %v613 = vsel %vm612, %v605, %v609
  %v614 = vand.u32 2147483647, %v604
  %vm615 = vcmp.eq.f32.partialorder %v614, 8.507059e+37
  %v616 = vand.u32 %v604, 2147483648
  %v617 = vor.u32 1.1754944e-38, %v616
  %v618 = vsel %vm615, %v617, %v613
  %v619 = vmul.f32 1.0, %v618
  %v620 = vtanh.pop %v600
  %v621 = vmul.f32 %v619, %v568
  %623 = vrot.lane.b32.xlu0 %v620, 64
  %v624 = vpop.permute.xlu0 %623
  %v626 = vmul.f32 %v619, %v624
  %628 = vrot.lane.b32.xlu0 %v626, 32
  %v629 = vpop.permute.xlu0 %628
  %v631 = vadd.f32 %v621, %v629
  %v632 = vtanh.pop %v631
  %634 = vrot.lane.b32.xlu0 %v632, 64
  %v635 = vpop.permute.xlu0 %634
  %v637 = vmul.f32 %v619, %v635
  %639 = vrot.lane.b32.xlu0 %v637, 32
  %v640 = vpop.permute.xlu0 %639
  %v641 = vsel %vm190, %v640, 0
  %643 = vmatpush.msra.mxu0 0.0
  %644 = vmatpush.msra.mxu0 0.0
  %645 = vmatpush.msra.mxu0 0.0
  %646 = vmatpush.msra.mxu0 0.0
  %647 = vmatpush.msra.mxu0 0.0
  %648 = vmatpush.msra.mxu0 0.0
  %649 = vmatpush.msra.mxu0 0.0
  %650 = vmatpush.msra.mxu0 0.0
  %651 = vmatpush.msra.mxu0 0.0
  %652 = vmatpush.msra.mxu0 0.0
  %653 = vmatpush.msra.mxu0 0.0
  %654 = vmatpush.msra.mxu0 0.0
  %655 = vmatpush.msra.mxu0 %v185
  %656 = vmatpush.msra.mxu0 %v184
  %657 = vmatpush.msra.mxu0 %v183
  %658 = vmatpush.msra.mxu0 %v182
  %659 = vmatmul.f32.gmra.mxu0 %v641
  %v660 = vpop.f32.mrf.mxu0
  %v661 = vadd.f32 0.0, %v660
  %662 = vdwg.mxu0
  %v663 = vadd.f32 %v251, %v661
  %v664 = vxor.u32 %v663, 2147483648
  %v665 = vmul.f32 %v664, 1.442695
  %v666 = vpow.pop %v665
  %v667 = vadd.f32 %v666, 1.0
  %v668 = vrcp.pop %v667
  %v669 = vmul.f32 %v667, %v668
  %v670 = vsub.f32 1.0, %v669
  %v671 = vmul.f32 %v668, %v670
  %v672 = vadd.f32 %v668, %v671
  %vm673 = vweird.f32 %v667
  %vm674 = vweird.f32 %v668
  %vm675 = vmor %vm673, %vm674
  %v676 = vsel %vm675, %v668, %v672
  %v677 = vand.u32 2147483647, %v667
  %vm678 = vcmp.eq.f32.partialorder %v677, 8.507059e+37
  %v679 = vand.u32 %v667, 2147483648
  %v680 = vor.u32 1.1754944e-38, %v679
  %v681 = vsel %vm678, %v680, %v676
  %v682 = vmul.f32 1.0, %v681
  %v683 = vtanh.pop %v663
  %v684 = vmul.f32 %v682, %v631
  %686 = vrot.lane.b32.xlu0 %v683, 64
  %v687 = vpop.permute.xlu0 %686
  %v689 = vmul.f32 %v682, %v687
  %691 = vrot.lane.b32.xlu0 %v689, 32
  %v692 = vpop.permute.xlu0 %691
  %v694 = vadd.f32 %v684, %v692
  %v695 = vtanh.pop %v694
  %697 = vrot.lane.b32.xlu0 %v695, 64
  %v698 = vpop.permute.xlu0 %697
  %v700 = vmul.f32 %v682, %v698
  %702 = vrot.lane.b32.xlu0 %v700, 32
  %v703 = vpop.permute.xlu0 %702
  %v704 = vsel %vm190, %v703, 0
  %706 = vmatpush.msra.mxu0 0.0
  %707 = vmatpush.msra.mxu0 0.0
  %708 = vmatpush.msra.mxu0 0.0
  %709 = vmatpush.msra.mxu0 0.0
  %710 = vmatpush.msra.mxu0 0.0
  %711 = vmatpush.msra.mxu0 0.0
  %712 = vmatpush.msra.mxu0 0.0
  %713 = vmatpush.msra.mxu0 0.0
  %714 = vmatpush.msra.mxu0 0.0
  %715 = vmatpush.msra.mxu0 0.0
  %716 = vmatpush.msra.mxu0 0.0
  %717 = vmatpush.msra.mxu0 0.0
  %718 = vmatpush.msra.mxu0 %v185
  %719 = vmatpush.msra.mxu0 %v184
  %720 = vmatpush.msra.mxu0 %v183
  %721 = vmatpush.msra.mxu0 %v182
  %722 = vmatmul.f32.gmra.mxu0 %v704
  %v723 = vpop.f32.mrf.mxu0
  %v724 = vadd.f32 0.0, %v723
  %725 = vdwg.mxu0
  %v726 = vadd.f32 %v254, %v724
  %v727 = vxor.u32 %v726, 2147483648
  %v728 = vmul.f32 %v727, 1.442695
  %v729 = vpow.pop %v728
  %v730 = vadd.f32 %v729, 1.0
  %v731 = vrcp.pop %v730
  %v732 = vmul.f32 %v730, %v731
  %v733 = vsub.f32 1.0, %v732
  %v734 = vmul.f32 %v731, %v733
  %v735 = vadd.f32 %v731, %v734
  %vm736 = vweird.f32 %v730
  %vm737 = vweird.f32 %v731
  %vm738 = vmor %vm736, %vm737
  %v739 = vsel %vm738, %v731, %v735
  %v740 = vand.u32 2147483647, %v730
  %vm741 = vcmp.eq.f32.partialorder %v740, 8.507059e+37
  %v742 = vand.u32 %v730, 2147483648
  %v743 = vor.u32 1.1754944e-38, %v742
  %v744 = vsel %vm741, %v743, %v739
  %v745 = vmul.f32 1.0, %v744
  %v746 = vtanh.pop %v726
  %v747 = vmul.f32 %v745, %v694
  %749 = vrot.lane.b32.xlu0 %v746, 64
  %v750 = vpop.permute.xlu0 %749
  %v752 = vmul.f32 %v745, %v750
  %754 = vrot.lane.b32.xlu0 %v752, 32
  %v755 = vpop.permute.xlu0 %754
  %v757 = vadd.f32 %v747, %v755
  %v758 = vtanh.pop %v757
  %760 = vrot.lane.b32.xlu0 %v758, 64
  %v761 = vpop.permute.xlu0 %760
  %v763 = vmul.f32 %v745, %v761
  %765 = vrot.lane.b32.xlu0 %v763, 32
  %v766 = vpop.permute.xlu0 %765
  %768 = vst.msk [vmem:[%s13] sm:$0xff] %vm190, %v766
  %770 = vrot.lane.b32.xlu0 %v757, 96
  %v771 = vpop.permute.xlu0 %770
  %773 = vst.msk [vmem:[%s14] sm:$0xff] %vm190, %v771
  %v774 = vld [vmem:[%s7] sm:$0xff]
  %v775 = vld [vmem:[%s7 + $0x8] sm:$0xff]
  %v776 = vld [vmem:[%s7 + $0x10] sm:$0xff]
  %v777 = vld [vmem:[%s7 + $0x18] sm:$0xff]
  %v778 = vld [vmem:[%s8] sm:$0xff]
  %v779 = vld [vmem:[%s8 + $0x8] sm:$0xff]
  %v780 = vld [vmem:[%s8 + $0x10] sm:$0xff]
  %v781 = vld [vmem:[%s8 + $0x18] sm:$0xff]
  %v782 = vld [vmem:[%s9] sm:$0x1]
  %v784 = vperm.slane %v782, 0
  %v786 = vsel %vm190, %v766, 0
  %788 = vmatpush.msra.mxu0 0.0
  %789 = vmatpush.msra.mxu0 0.0
  %790 = vmatpush.msra.mxu0 0.0
  %791 = vmatpush.msra.mxu0 0.0
  %792 = vmatpush.msra.mxu0 0.0
  %793 = vmatpush.msra.mxu0 0.0
  %794 = vmatpush.msra.mxu0 0.0
  %795 = vmatpush.msra.mxu0 0.0
  %796 = vmatpush.msra.mxu0 0.0
  %797 = vmatpush.msra.mxu0 0.0
  %798 = vmatpush.msra.mxu0 0.0
  %799 = vmatpush.msra.mxu0 0.0
  %800 = vmatpush.msra.mxu0 %v777
  %801 = vmatpush.msra.mxu0 %v776
  %802 = vmatpush.msra.mxu0 %v775
  %803 = vmatpush.msra.mxu0 %v774
  %804 = vmatmul.f32.gmra.mxu0 %v326
  %v805 = vpop.f32.mrf.mxu0
  %v806 = vadd.f32 %v784, %v805
  %807 = vmatmul.f32.gmra.mxu0 %v389
  %v808 = vpop.f32.mrf.mxu0
  %v809 = vadd.f32 %v784, %v808
  %810 = vmatmul.f32.gmra.mxu0 %v452
  %v811 = vpop.f32.mrf.mxu0
  %v812 = vadd.f32 %v784, %v811
  %813 = vmatmul.f32.gmra.mxu0 %v515
  %v814 = vpop.f32.mrf.mxu0
  %v815 = vadd.f32 %v784, %v814
  %816 = vmatmul.f32.gmra.mxu0 %v578
  %v817 = vpop.f32.mrf.mxu0
  %v818 = vadd.f32 %v784, %v817
  %819 = vmatmul.f32.gmra.mxu0 %v641
  %v820 = vpop.f32.mrf.mxu0
  %v821 = vadd.f32 %v784, %v820
  %822 = vmatmul.f32.gmra.mxu0 %v704
  %v823 = vpop.f32.mrf.mxu0
  %v824 = vadd.f32 %v784, %v823
  %825 = vmatmul.f32.gmra.mxu0 %v786
  %v826 = vpop.f32.mrf.mxu0
  %v827 = vadd.f32 %v784, %v826
  %828 = vdwg.mxu0
  %s829 = scalar_lea.vmem %s2, 8
  %v830 = vld [vmem:[%s829] sm:$0xff]
  %s831 = scalar_lea.vmem %s3, 8
  %v832 = vld [vmem:[%s831] sm:$0xff]
  %v834 = vsel %vm190, %v830, 0
  %836 = vmatpush.msra.mxu0 0.0
  %837 = vmatpush.msra.mxu0 0.0
  %838 = vmatpush.msra.mxu0 0.0
  %839 = vmatpush.msra.mxu0 0.0
  %840 = vmatpush.msra.mxu0 0.0
  %841 = vmatpush.msra.mxu0 0.0
  %842 = vmatpush.msra.mxu0 0.0
  %843 = vmatpush.msra.mxu0 0.0
  %844 = vmatpush.msra.mxu0 0.0
  %845 = vmatpush.msra.mxu0 0.0
  %846 = vmatpush.msra.mxu0 0.0
  %847 = vmatpush.msra.mxu0 0.0
  %848 = vmatpush.msra.mxu0 %v781
  %849 = vmatpush.msra.mxu0 %v780
  %850 = vmatpush.msra.mxu0 %v779
  %851 = vmatpush.msra.mxu0 %v778
  %852 = vmatmul.f32.gmra.mxu0 %v834
  %v853 = vpop.f32.mrf.mxu0
  %v854 = vadd.f32 0.0, %v853
  %855 = vdwg.mxu0
  %v856 = vadd.f32 %v806, %v854
  %v857 = vxor.u32 %v856, 2147483648
  %v858 = vmul.f32 %v857, 1.442695
  %v859 = vpow.pop %v858
  %v860 = vadd.f32 %v859, 1.0
  %v861 = vrcp.pop %v860
  %v862 = vmul.f32 %v860, %v861
  %v863 = vsub.f32 1.0, %v862
  %v864 = vmul.f32 %v861, %v863
  %v865 = vadd.f32 %v861, %v864
  %vm866 = vweird.f32 %v860
  %vm867 = vweird.f32 %v861
  %vm868 = vmor %vm866, %vm867
  %v869 = vsel %vm868, %v861, %v865
  %v870 = vand.u32 2147483647, %v860
  %vm871 = vcmp.eq.f32.partialorder %v870, 8.507059e+37
  %v872 = vand.u32 %v860, 2147483648
  %v873 = vor.u32 1.1754944e-38, %v872
  %v874 = vsel %vm871, %v873, %v869
  %v875 = vmul.f32 1.0, %v874
  %v876 = vtanh.pop %v856
  %878 = vrot.lane.b32.xlu0 %v832, 32
  %v879 = vpop.permute.xlu0 %878
  %v881 = vmul.f32 %v875, %v879
  %883 = vrot.lane.b32.xlu0 %v876, 64
  %v884 = vpop.permute.xlu0 %883
  %v886 = vmul.f32 %v875, %v884
  %888 = vrot.lane.b32.xlu0 %v886, 32
  %v889 = vpop.permute.xlu0 %888
  %v891 = vadd.f32 %v881, %v889
  %v892 = vtanh.pop %v891
  %894 = vrot.lane.b32.xlu0 %v892, 64
  %v895 = vpop.permute.xlu0 %894
  %v897 = vmul.f32 %v875, %v895
  %899 = vrot.lane.b32.xlu0 %v897, 32
  %v900 = vpop.permute.xlu0 %899
  %v901 = vsel %vm190, %v900, 0
  %903 = vmatpush.msra.mxu0 0.0
  %904 = vmatpush.msra.mxu0 0.0
  %905 = vmatpush.msra.mxu0 0.0
  %906 = vmatpush.msra.mxu0 0.0
  %907 = vmatpush.msra.mxu0 0.0
  %908 = vmatpush.msra.mxu0 0.0
  %909 = vmatpush.msra.mxu0 0.0
  %910 = vmatpush.msra.mxu0 0.0
  %911 = vmatpush.msra.mxu0 0.0
  %912 = vmatpush.msra.mxu0 0.0
  %913 = vmatpush.msra.mxu0 0.0
  %914 = vmatpush.msra.mxu0 0.0
  %915 = vmatpush.msra.mxu0 %v781
  %916 = vmatpush.msra.mxu0 %v780
  %917 = vmatpush.msra.mxu0 %v779
  %918 = vmatpush.msra.mxu0 %v778
  %919 = vmatmul.f32.gmra.mxu0 %v901
  %v920 = vpop.f32.mrf.mxu0
  %v921 = vadd.f32 0.0, %v920
  %922 = vdwg.mxu0
  %v923 = vadd.f32 %v809, %v921
  %v924 = vxor.u32 %v923, 2147483648
  %v925 = vmul.f32 %v924, 1.442695
  %v926 = vpow.pop %v925
  %v927 = vadd.f32 %v926, 1.0
  %v928 = vrcp.pop %v927
  %v929 = vmul.f32 %v927, %v928
  %v930 = vsub.f32 1.0, %v929
  %v931 = vmul.f32 %v928, %v930
  %v932 = vadd.f32 %v928, %v931
  %vm933 = vweird.f32 %v927
  %vm934 = vweird.f32 %v928
  %vm935 = vmor %vm933, %vm934
  %v936 = vsel %vm935, %v928, %v932
  %v937 = vand.u32 2147483647, %v927
  %vm938 = vcmp.eq.f32.partialorder %v937, 8.507059e+37
  %v939 = vand.u32 %v927, 2147483648
  %v940 = vor.u32 1.1754944e-38, %v939
  %v941 = vsel %vm938, %v940, %v936
  %v942 = vmul.f32 1.0, %v941
  %v943 = vtanh.pop %v923
  %v944 = vmul.f32 %v942, %v891
  %946 = vrot.lane.b32.xlu0 %v943, 64
  %v947 = vpop.permute.xlu0 %946
  %v949 = vmul.f32 %v942, %v947
  %951 = vrot.lane.b32.xlu0 %v949, 32
  %v952 = vpop.permute.xlu0 %951
  %v954 = vadd.f32 %v944, %v952
  %v955 = vtanh.pop %v954
  %957 = vrot.lane.b32.xlu0 %v955, 64
  %v958 = vpop.permute.xlu0 %957
  %v960 = vmul.f32 %v942, %v958
  %962 = vrot.lane.b32.xlu0 %v960, 32
  %v963 = vpop.permute.xlu0 %962
  %v964 = vsel %vm190, %v963, 0
  %966 = vmatpush.msra.mxu0 0.0
  %967 = vmatpush.msra.mxu0 0.0
  %968 = vmatpush.msra.mxu0 0.0
  %969 = vmatpush.msra.mxu0 0.0
  %970 = vmatpush.msra.mxu0 0.0
  %971 = vmatpush.msra.mxu0 0.0
  %972 = vmatpush.msra.mxu0 0.0
  %973 = vmatpush.msra.mxu0 0.0
  %974 = vmatpush.msra.mxu0 0.0
  %975 = vmatpush.msra.mxu0 0.0
  %976 = vmatpush.msra.mxu0 0.0
  %977 = vmatpush.msra.mxu0 0.0
  %978 = vmatpush.msra.mxu0 %v781
  %979 = vmatpush.msra.mxu0 %v780
  %980 = vmatpush.msra.mxu0 %v779
  %981 = vmatpush.msra.mxu0 %v778
  %982 = vmatmul.f32.gmra.mxu0 %v964
  %v983 = vpop.f32.mrf.mxu0
  %v984 = vadd.f32 0.0, %v983
  %985 = vdwg.mxu0
  %v986 = vadd.f32 %v812, %v984
  %v987 = vxor.u32 %v986, 2147483648
  %v988 = vmul.f32 %v987, 1.442695
  %v989 = vpow.pop %v988
  %v990 = vadd.f32 %v989, 1.0
  %v991 = vrcp.pop %v990
  %v992 = vmul.f32 %v990, %v991
  %v993 = vsub.f32 1.0, %v992
  %v994 = vmul.f32 %v991, %v993
  %v995 = vadd.f32 %v991, %v994
  %vm996 = vweird.f32 %v990
  %vm997 = vweird.f32 %v991
  %vm998 = vmor %vm996, %vm997
  %v999 = vsel %vm998, %v991, %v995
  %v1000 = vand.u32 2147483647, %v990
  %vm1001 = vcmp.eq.f32.partialorder %v1000, 8.507059e+37
  %v1002 = vand.u32 %v990, 2147483648
  %v1003 = vor.u32 1.1754944e-38, %v1002
  %v1004 = vsel %vm1001, %v1003, %v999
  %v1005 = vmul.f32 1.0, %v1004
  %v1006 = vtanh.pop %v986
  %v1007 = vmul.f32 %v1005, %v954
  %1009 = vrot.lane.b32.xlu0 %v1006, 64
  %v1010 = vpop.permute.xlu0 %1009
  %v1012 = vmul.f32 %v1005, %v1010
  %1014 = vrot.lane.b32.xlu0 %v1012, 32
  %v1015 = vpop.permute.xlu0 %1014
  %v1017 = vadd.f32 %v1007, %v1015
  %v1018 = vtanh.pop %v1017
  %1020 = vrot.lane.b32.xlu0 %v1018, 64
  %v1021 = vpop.permute.xlu0 %1020
  %v1023 = vmul.f32 %v1005, %v1021
  %1025 = vrot.lane.b32.xlu0 %v1023, 32
  %v1026 = vpop.permute.xlu0 %1025
  %v1027 = vsel %vm190, %v1026, 0
  %1029 = vmatpush.msra.mxu0 0.0
  %1030 = vmatpush.msra.mxu0 0.0
  %1031 = vmatpush.msra.mxu0 0.0
  %1032 = vmatpush.msra.mxu0 0.0
  %1033 = vmatpush.msra.mxu0 0.0
  %1034 = vmatpush.msra.mxu0 0.0
  %1035 = vmatpush.msra.mxu0 0.0
  %1036 = vmatpush.msra.mxu0 0.0
  %1037 = vmatpush.msra.mxu0 0.0
  %1038 = vmatpush.msra.mxu0 0.0
  %1039 = vmatpush.msra.mxu0 0.0
  %1040 = vmatpush.msra.mxu0 0.0
  %1041 = vmatpush.msra.mxu0 %v781
  %1042 = vmatpush.msra.mxu0 %v780
  %1043 = vmatpush.msra.mxu0 %v779
  %1044 = vmatpush.msra.mxu0 %v778
  %1045 = vmatmul.f32.gmra.mxu0 %v1027
  %v1046 = vpop.f32.mrf.mxu0
  %v1047 = vadd.f32 0.0, %v1046
  %1048 = vdwg.mxu0
  %v1049 = vadd.f32 %v815, %v1047
  %v1050 = vxor.u32 %v1049, 2147483648
  %v1051 = vmul.f32 %v1050, 1.442695
  %v1052 = vpow.pop %v1051
  %v1053 = vadd.f32 %v1052, 1.0
  %v1054 = vrcp.pop %v1053
  %v1055 = vmul.f32 %v1053, %v1054
  %v1056 = vsub.f32 1.0, %v1055
  %v1057 = vmul.f32 %v1054, %v1056
  %v1058 = vadd.f32 %v1054, %v1057
  %vm1059 = vweird.f32 %v1053
  %vm1060 = vweird.f32 %v1054
  %vm1061 = vmor %vm1059, %vm1060
  %v1062 = vsel %vm1061, %v1054, %v1058
  %v1063 = vand.u32 2147483647, %v1053
  %vm1064 = vcmp.eq.f32.partialorder %v1063, 8.507059e+37
  %v1065 = vand.u32 %v1053, 2147483648
  %v1066 = vor.u32 1.1754944e-38, %v1065
  %v1067 = vsel %vm1064, %v1066, %v1062
  %v1068 = vmul.f32 1.0, %v1067
  %v1069 = vtanh.pop %v1049
  %v1070 = vmul.f32 %v1068, %v1017
  %1072 = vrot.lane.b32.xlu0 %v1069, 64
  %v1073 = vpop.permute.xlu0 %1072
  %v1075 = vmul.f32 %v1068, %v1073
  %1077 = vrot.lane.b32.xlu0 %v1075, 32
  %v1078 = vpop.permute.xlu0 %1077
  %v1080 = vadd.f32 %v1070, %v1078
  %v1081 = vtanh.pop %v1080
  %1083 = vrot.lane.b32.xlu0 %v1081, 64
  %v1084 = vpop.permute.xlu0 %1083
  %v1086 = vmul.f32 %v1068, %v1084
  %1088 = vrot.lane.b32.xlu0 %v1086, 32
  %v1089 = vpop.permute.xlu0 %1088
  %v1090 = vsel %vm190, %v1089, 0
  %1092 = vmatpush.msra.mxu0 0.0
  %1093 = vmatpush.msra.mxu0 0.0
  %1094 = vmatpush.msra.mxu0 0.0
  %1095 = vmatpush.msra.mxu0 0.0
  %1096 = vmatpush.msra.mxu0 0.0
  %1097 = vmatpush.msra.mxu0 0.0
  %1098 = vmatpush.msra.mxu0 0.0
  %1099 = vmatpush.msra.mxu0 0.0
  %1100 = vmatpush.msra.mxu0 0.0
  %1101 = vmatpush.msra.mxu0 0.0
  %1102 = vmatpush.msra.mxu0 0.0
  %1103 = vmatpush.msra.mxu0 0.0
  %1104 = vmatpush.msra.mxu0 %v781
  %1105 = vmatpush.msra.mxu0 %v780
  %1106 = vmatpush.msra.mxu0 %v779
  %1107 = vmatpush.msra.mxu0 %v778
  %1108 = vmatmul.f32.gmra.mxu0 %v1090
  %v1109 = vpop.f32.mrf.mxu0
  %v1110 = vadd.f32 0.0, %v1109
  %1111 = vdwg.mxu0
  %v1112 = vadd.f32 %v818, %v1110
  %v1113 = vxor.u32 %v1112, 2147483648
  %v1114 = vmul.f32 %v1113, 1.442695
  %v1115 = vpow.pop %v1114
  %v1116 = vadd.f32 %v1115, 1.0
  %v1117 = vrcp.pop %v1116
  %v1118 = vmul.f32 %v1116, %v1117
  %v1119 = vsub.f32 1.0, %v1118
  %v1120 = vmul.f32 %v1117, %v1119
  %v1121 = vadd.f32 %v1117, %v1120
  %vm1122 = vweird.f32 %v1116
  %vm1123 = vweird.f32 %v1117
  %vm1124 = vmor %vm1122, %vm1123
  %v1125 = vsel %vm1124, %v1117, %v1121
  %v1126 = vand.u32 2147483647, %v1116
  %vm1127 = vcmp.eq.f32.partialorder %v1126, 8.507059e+37
  %v1128 = vand.u32 %v1116, 2147483648
  %v1129 = vor.u32 1.1754944e-38, %v1128
  %v1130 = vsel %vm1127, %v1129, %v1125
  %v1131 = vmul.f32 1.0, %v1130
  %v1132 = vtanh.pop %v1112
  %v1133 = vmul.f32 %v1131, %v1080
  %1135 = vrot.lane.b32.xlu0 %v1132, 64
  %v1136 = vpop.permute.xlu0 %1135
  %v1138 = vmul.f32 %v1131, %v1136
  %1140 = vrot.lane.b32.xlu0 %v1138, 32
  %v1141 = vpop.permute.xlu0 %1140
  %v1143 = vadd.f32 %v1133, %v1141
  %v1144 = vtanh.pop %v1143
  %1146 = vrot.lane.b32.xlu0 %v1144, 64
  %v1147 = vpop.permute.xlu0 %1146
  %v1149 = vmul.f32 %v1131, %v1147
  %1151 = vrot.lane.b32.xlu0 %v1149, 32
  %v1152 = vpop.permute.xlu0 %1151
  %v1153 = vsel %vm190, %v1152, 0
  %1155 = vmatpush.msra.mxu0 0.0
  %1156 = vmatpush.msra.mxu0 0.0
  %1157 = vmatpush.msra.mxu0 0.0
  %1158 = vmatpush.msra.mxu0 0.0
  %1159 = vmatpush.msra.mxu0 0.0
  %1160 = vmatpush.msra.mxu0 0.0
  %1161 = vmatpush.msra.mxu0 0.0
  %1162 = vmatpush.msra.mxu0 0.0
  %1163 = vmatpush.msra.mxu0 0.0
  %1164 = vmatpush.msra.mxu0 0.0
  %1165 = vmatpush.msra.mxu0 0.0
  %1166 = vmatpush.msra.mxu0 0.0
  %1167 = vmatpush.msra.mxu0 %v781
  %1168 = vmatpush.msra.mxu0 %v780
  %1169 = vmatpush.msra.mxu0 %v779
  %1170 = vmatpush.msra.mxu0 %v778
  %1171 = vmatmul.f32.gmra.mxu0 %v1153
  %v1172 = vpop.f32.mrf.mxu0
  %v1173 = vadd.f32 0.0, %v1172
  %1174 = vdwg.mxu0
  %v1175 = vadd.f32 %v821, %v1173
  %v1176 = vxor.u32 %v1175, 2147483648
  %v1177 = vmul.f32 %v1176, 1.442695
  %v1178 = vpow.pop %v1177
  %v1179 = vadd.f32 %v1178, 1.0
  %v1180 = vrcp.pop %v1179
  %v1181 = vmul.f32 %v1179, %v1180
  %v1182 = vsub.f32 1.0, %v1181
  %v1183 = vmul.f32 %v1180, %v1182
  %v1184 = vadd.f32 %v1180, %v1183
  %vm1185 = vweird.f32 %v1179
  %vm1186 = vweird.f32 %v1180
  %vm1187 = vmor %vm1185, %vm1186
  %v1188 = vsel %vm1187, %v1180, %v1184
  %v1189 = vand.u32 2147483647, %v1179
  %vm1190 = vcmp.eq.f32.partialorder %v1189, 8.507059e+37
  %v1191 = vand.u32 %v1179, 2147483648
  %v1192 = vor.u32 1.1754944e-38, %v1191
  %v1193 = vsel %vm1190, %v1192, %v1188
  %v1194 = vmul.f32 1.0, %v1193
  %v1195 = vtanh.pop %v1175
  %v1196 = vmul.f32 %v1194, %v1143
  %1198 = vrot.lane.b32.xlu0 %v1195, 64
  %v1199 = vpop.permute.xlu0 %1198
  %v1201 = vmul.f32 %v1194, %v1199
  %1203 = vrot.lane.b32.xlu0 %v1201, 32
  %v1204 = vpop.permute.xlu0 %1203
  %v1206 = vadd.f32 %v1196, %v1204
  %v1207 = vtanh.pop %v1206
  %1209 = vrot.lane.b32.xlu0 %v1207, 64
  %v1210 = vpop.permute.xlu0 %1209
  %v1212 = vmul.f32 %v1194, %v1210
  %1214 = vrot.lane.b32.xlu0 %v1212, 32
  %v1215 = vpop.permute.xlu0 %1214
  %v1216 = vsel %vm190, %v1215, 0
  %1218 = vmatpush.msra.mxu0 0.0
  %1219 = vmatpush.msra.mxu0 0.0
  %1220 = vmatpush.msra.mxu0 0.0
  %1221 = vmatpush.msra.mxu0 0.0
  %1222 = vmatpush.msra.mxu0 0.0
  %1223 = vmatpush.msra.mxu0 0.0
  %1224 = vmatpush.msra.mxu0 0.0
  %1225 = vmatpush.msra.mxu0 0.0
  %1226 = vmatpush.msra.mxu0 0.0
  %1227 = vmatpush.msra.mxu0 0.0
  %1228 = vmatpush.msra.mxu0 0.0
  %1229 = vmatpush.msra.mxu0 0.0
  %1230 = vmatpush.msra.mxu0 %v781
  %1231 = vmatpush.msra.mxu0 %v780
  %1232 = vmatpush.msra.mxu0 %v779
  %1233 = vmatpush.msra.mxu0 %v778
  %1234 = vmatmul.f32.gmra.mxu0 %v1216
  %v1235 = vpop.f32.mrf.mxu0
  %v1236 = vadd.f32 0.0, %v1235
  %1237 = vdwg.mxu0
  %v1238 = vadd.f32 %v824, %v1236
  %v1239 = vxor.u32 %v1238, 2147483648
  %v1240 = vmul.f32 %v1239, 1.442695
  %v1241 = vpow.pop %v1240
  %v1242 = vadd.f32 %v1241, 1.0
  %v1243 = vrcp.pop %v1242
  %v1244 = vmul.f32 %v1242, %v1243
  %v1245 = vsub.f32 1.0, %v1244
  %v1246 = vmul.f32 %v1243, %v1245
  %v1247 = vadd.f32 %v1243, %v1246
  %vm1248 = vweird.f32 %v1242
  %vm1249 = vweird.f32 %v1243
  %vm1250 = vmor %vm1248, %vm1249
  %v1251 = vsel %vm1250, %v1243, %v1247
  %v1252 = vand.u32 2147483647, %v1242
  %vm1253 = vcmp.eq.f32.partialorder %v1252, 8.507059e+37
  %v1254 = vand.u32 %v1242, 2147483648
  %v1255 = vor.u32 1.1754944e-38, %v1254
  %v1256 = vsel %vm1253, %v1255, %v1251
  %v1257 = vmul.f32 1.0, %v1256
  %v1258 = vtanh.pop %v1238
  %v1259 = vmul.f32 %v1257, %v1206
  %1261 = vrot.lane.b32.xlu0 %v1258, 64
  %v1262 = vpop.permute.xlu0 %1261
  %v1264 = vmul.f32 %v1257, %v1262
  %1266 = vrot.lane.b32.xlu0 %v1264, 32
  %v1267 = vpop.permute.xlu0 %1266
  %v1269 = vadd.f32 %v1259, %v1267
  %v1270 = vtanh.pop %v1269
  %1272 = vrot.lane.b32.xlu0 %v1270, 64
  %v1273 = vpop.permute.xlu0 %1272
  %v1275 = vmul.f32 %v1257, %v1273
  %1277 = vrot.lane.b32.xlu0 %v1275, 32
  %v1278 = vpop.permute.xlu0 %1277
  %v1279 = vsel %vm190, %v1278, 0
  %1281 = vmatpush.msra.mxu0 0.0
  %1282 = vmatpush.msra.mxu0 0.0
  %1283 = vmatpush.msra.mxu0 0.0
  %1284 = vmatpush.msra.mxu0 0.0
  %1285 = vmatpush.msra.mxu0 0.0
  %1286 = vmatpush.msra.mxu0 0.0
  %1287 = vmatpush.msra.mxu0 0.0
  %1288 = vmatpush.msra.mxu0 0.0
  %1289 = vmatpush.msra.mxu0 0.0
  %1290 = vmatpush.msra.mxu0 0.0
  %1291 = vmatpush.msra.mxu0 0.0
  %1292 = vmatpush.msra.mxu0 0.0
  %1293 = vmatpush.msra.mxu0 %v781
  %1294 = vmatpush.msra.mxu0 %v780
  %1295 = vmatpush.msra.mxu0 %v779
  %1296 = vmatpush.msra.mxu0 %v778
  %1297 = vmatmul.f32.gmra.mxu0 %v1279
  %v1298 = vpop.f32.mrf.mxu0
  %v1299 = vadd.f32 0.0, %v1298
  %1300 = vdwg.mxu0
  %v1301 = vadd.f32 %v827, %v1299
  %v1302 = vxor.u32 %v1301, 2147483648
  %v1303 = vmul.f32 %v1302, 1.442695
  %v1304 = vpow.pop %v1303
  %v1305 = vadd.f32 %v1304, 1.0
  %v1306 = vrcp.pop %v1305
  %v1307 = vmul.f32 %v1305, %v1306
  %v1308 = vsub.f32 1.0, %v1307
  %v1309 = vmul.f32 %v1306, %v1308
  %v1310 = vadd.f32 %v1306, %v1309
  %vm1311 = vweird.f32 %v1305
  %vm1312 = vweird.f32 %v1306
  %vm1313 = vmor %vm1311, %vm1312
  %v1314 = vsel %vm1313, %v1306, %v1310
  %v1315 = vand.u32 2147483647, %v1305
  %vm1316 = vcmp.eq.f32.partialorder %v1315, 8.507059e+37
  %v1317 = vand.u32 %v1305, 2147483648
  %v1318 = vor.u32 1.1754944e-38, %v1317
  %v1319 = vsel %vm1316, %v1318, %v1314
  %v1320 = vmul.f32 1.0, %v1319
  %v1321 = vtanh.pop %v1301
  %v1322 = vmul.f32 %v1320, %v1269
  %1324 = vrot.lane.b32.xlu0 %v1321, 64
  %v1325 = vpop.permute.xlu0 %1324
  %v1327 = vmul.f32 %v1320, %v1325
  %1329 = vrot.lane.b32.xlu0 %v1327, 32
  %v1330 = vpop.permute.xlu0 %1329
  %v1332 = vadd.f32 %v1322, %v1330
  %v1333 = vtanh.pop %v1332
  %1335 = vrot.lane.b32.xlu0 %v1333, 64
  %v1336 = vpop.permute.xlu0 %1335
  %v1338 = vmul.f32 %v1320, %v1336
  %1340 = vrot.lane.b32.xlu0 %v1338, 32
  %v1341 = vpop.permute.xlu0 %1340
  %s1343 = scalar_lea.vmem %s13, 8
  %1344 = vst.msk [vmem:[%s1343] sm:$0xff] %vm190, %v1341
  %1346 = vrot.lane.b32.xlu0 %v1332, 96
  %v1347 = vpop.permute.xlu0 %1346
  %s1349 = scalar_lea.vmem %s14, 8
  %1350 = vst.msk [vmem:[%s1349] sm:$0xff] %vm190, %v1347
  %v1351 = vld [vmem:[%s10] sm:$0xff]
  %v1352 = vld [vmem:[%s10 + $0x8] sm:$0xff]
  %v1353 = vld [vmem:[%s10 + $0x10] sm:$0xff]
  %v1354 = vld [vmem:[%s10 + $0x18] sm:$0xff]
  %v1355 = vld [vmem:[#allocation2] sm:$0x1]
  %v1357 = vperm.slane %v1355, 0
  %v1359 = vsel %vm190, %v1341, 0
  %1361 = vmatpush.msra.mxu0 0.0
  %1362 = vmatpush.msra.mxu0 0.0
  %1363 = vmatpush.msra.mxu0 0.0
  %1364 = vmatpush.msra.mxu0 0.0
  %1365 = vmatpush.msra.mxu0 0.0
  %1366 = vmatpush.msra.mxu0 0.0
  %1367 = vmatpush.msra.mxu0 0.0
  %1368 = vmatpush.msra.mxu0 0.0
  %1369 = vmatpush.msra.mxu0 0.0
  %1370 = vmatpush.msra.mxu0 0.0
  %1371 = vmatpush.msra.mxu0 0.0
  %1372 = vmatpush.msra.mxu0 0.0
  %1373 = vmatpush.msra.mxu0 %v1354
  %1374 = vmatpush.msra.mxu0 %v1353
  %1375 = vmatpush.msra.mxu0 %v1352
  %1376 = vmatpush.msra.mxu0 %v1351
  %1377 = vmatmul.f32.gmra.mxu0 %v1359
  %v1378 = vpop.f32.mrf.mxu0
  %v1379 = vadd.f32 %v1357, %v1378
  %1380 = vdwg.mxu0
  %v1381 = vxor.u32 %v1379, 2147483648
  %v1382 = vmul.f32 %v1381, 1.442695
  %v1383 = vpow.pop %v1382
  %v1384 = vadd.f32 %v1383, 1.0
  %v1385 = vrcp.pop %v1384
  %v1386 = vmul.f32 %v1384, %v1385
  %v1387 = vsub.f32 1.0, %v1386
  %v1388 = vmul.f32 %v1385, %v1387
  %v1389 = vadd.f32 %v1385, %v1388
  %vm1390 = vweird.f32 %v1384
  %vm1391 = vweird.f32 %v1385
  %vm1392 = vmor %vm1390, %vm1391
  %v1393 = vsel %vm1392, %v1385, %v1389
  %v1394 = vand.u32 2147483647, %v1384
  %vm1395 = vcmp.eq.f32.partialorder %v1394, 8.507059e+37
  %v1396 = vand.u32 %v1384, 2147483648
  %v1397 = vor.u32 1.1754944e-38, %v1396
  %v1398 = vsel %vm1395, %v1397, %v1393
  %v1399 = vmul.f32 1.0, %v1398
  %vm1400 = vcmask 7168
  %1401 = vst.msk [vmem:[%s12] sm:$0xff] %vm1400, %v1399
  // Predicated region
  $region50: #{sentiment_rnn_forward.1} parent=0 // pred_check
    _
  $region51: #{sentiment_rnn_forward.1} parent=0 // pred_check_branch
    %1403 = sbr.rel (0) target = $region53
  $region52: #{sentiment_rnn_forward.1} parent=0 // pred_region
    _
  $region53: #{sentiment_rnn_forward.1} parent=0 // pred_fallthru
    _
  // Predicated region
  $region54: #{sentiment_rnn_forward.1} parent=0 // pred_check
    _
  $region55: #{sentiment_rnn_forward.1} parent=0 // pred_check_branch
    %1405 = sbr.rel (0) target = $region57
  $region56: #{sentiment_rnn_forward.1} parent=0 // pred_region
    _
  $region57: #{sentiment_rnn_forward.1} parent=0 // pred_fallthru
    _
  // Predicated region
  $region58: #{sentiment_rnn_forward.1} parent=0 // pred_check
    _
  $region59: #{sentiment_rnn_forward.1} parent=0 // pred_check_branch
    %1407 = sbr.rel (0) target = $region61
  $region60: #{sentiment_rnn_forward.1} parent=0 // pred_region
    _
  $region61: #{sentiment_rnn_forward.1} parent=0 // pred_fallthru
    _
  // Predicated region
  $region62: #{sentiment_rnn_forward.1} parent=0 // pred_check
    _
  $region63: #{sentiment_rnn_forward.1} parent=0 // pred_check_branch
    %1409 = sbr.rel (0) target = $region65
  $region64: #{sentiment_rnn_forward.1} parent=0 // pred_region
    _
  $region65: #{sentiment_rnn_forward.1} parent=0 // pred_fallthru
    _
  // Predicated region
  $region66: #{sentiment_rnn_forward.1} parent=0 // pred_check
    _
  $region67: #{sentiment_rnn_forward.1} parent=0 // pred_check_branch
    %1411 = sbr.rel (0) target = $region69
  $region68: #{sentiment_rnn_forward.1} parent=0 // pred_region
    _
  $region69: #{sentiment_rnn_forward.1} parent=0 // pred_fallthru
    _
  // Predicated region
  $region70: #{sentiment_rnn_forward.1} parent=0 // pred_check
    _
  $region71: #{sentiment_rnn_forward.1} parent=0 // pred_check_branch
    %1413 = sbr.rel (0) target = $region73
  $region72: #{sentiment_rnn_forward.1} parent=0 // pred_region
    _
  $region73: #{sentiment_rnn_forward.1} parent=0 // pred_fallthru
    _

</llo_original>
